<compile_context>
chip_gen: v7x
topology: tpu7x:2x2x1
jax: 0.10.0
libtpu: 0.0.40
codegen_flags: <defaults>
</compile_context>

<pallas_src>
import functools
import jax
import jax.numpy as jnp
from jax.experimental import pallas as pl
from jax.experimental.pallas import tpu as pltpu


def _default_vmem_limit():
    try:
        kind = jax.devices()[0].device_kind.lower()
    except Exception:
        kind = ""
    if "v7" in kind:
        return 40 * 1024 * 1024      # v7x: 64 MiB physical VMEM -> leave headroom
    return 64 * 1024 * 1024          # v5e / v6e: 128 MiB physical


_VMEM_LIMIT = _default_vmem_limit()
_ACC_BYTES = 2 * 1024 * 1024         # bound on per-step f32 accumulator size


def _pick_tile(dim, cap, mults):
    """Largest divisor of `dim` <= cap that is a multiple of one of `mults`.
    Falls back to the full dim (a 'full' block is always legal)."""
    cap = min(cap, dim)
    for m in mults:
        for d in range(cap, m - 1, -1):
            if d % m == 0 and dim % d == 0:
                return d
    return dim


# --------------------------------------------------------------------------- #
# Tiled MXU matmul: act(A @ B + bias) [+ residual], bf16 I/O, f32 accumulation
# --------------------------------------------------------------------------- #

def _mm_kernel(a_ref, b_ref, bias_ref, *rest, act, has_res):
    if has_res:
        res_ref, o_ref, acc_ref = rest
    else:
        o_ref, acc_ref = rest
    k = pl.program_id(2)

    @pl.when(k == 0)
    def _():
        acc_ref[...] = jnp.zeros_like(acc_ref)

    acc_ref[...] += jnp.dot(a_ref[...], b_ref[...],
                            preferred_element_type=jnp.float32)

    @pl.when(k == pl.num_programs(2) - 1)
    def _():
        acc = acc_ref[...] + bias_ref[...]
        if act == "silu":
            acc = acc * jax.nn.sigmoid(acc)
        if has_res:
            acc = acc + res_ref[...].astype(jnp.float32)
        o_ref[...] = acc.astype(o_ref.dtype)


def matmul_bias_act(a, b, bias, act="none", residual=None, out_dtype=jnp.bfloat16):
    """a: (M, K), b: (K, N) pre-packed bf16, bias: (1, N) f32."""
    M, K = a.shape
    K2, N = b.shape
    assert K == K2 and bias.shape == (1, N)
    tm = _pick_tile(M, 512, (16, 8))
    tn = _pick_tile(N, 512, (128,)) if N % 128 == 0 else N
    tk = _pick_tile(K, 512, (128,)) if K % 128 == 0 else K

    a = a.astype(jnp.bfloat16)
    b = b.astype(jnp.bfloat16)
    bias = bias.astype(jnp.float32)
    args = [a, b, bias]
    in_specs = [
        pl.BlockSpec((tm, tk), lambda i, j, k: (i, k)),
        pl.BlockSpec((tk, tn), lambda i, j, k: (k, j)),
        pl.BlockSpec((1, tn), lambda i, j, k: (0, j)),
    ]
    has_res = residual is not None
    if has_res:
        args.append(residual.astype(jnp.bfloat16))
        in_specs.append(pl.BlockSpec((tm, tn), lambda i, j, k: (i, j)))

    return pl.pallas_call(
        functools.partial(_mm_kernel, act=act, has_res=has_res),
        out_shape=jax.ShapeDtypeStruct((M, N), out_dtype),
        grid_spec=pltpu.PrefetchScalarGridSpec(
            num_scalar_prefetch=0,
            grid=(M // tm, N // tn, K // tk),
            in_specs=in_specs,
            out_specs=pl.BlockSpec((tm, tn), lambda i, j, k: (i, j)),
            scratch_shapes=[pltpu.VMEM((tm, tn), jnp.float32)],
        ),
        compiler_params=pltpu.CompilerParams(
            dimension_semantics=("parallel", "parallel", "arbitrary"),
            vmem_limit_bytes=_VMEM_LIMIT,
        ),
    )(*args)


# --------------------------------------------------------------------------- #
# Direct (no im2col) stride-1 3x3 conv + bias + SiLU [+ residual]
#   grid = (N, row_chunks); input read as row-chunk + 2 halo rows from the next
#   row block (two block-aligned specs over the same padded array).
# --------------------------------------------------------------------------- #

def _conv3x3_kernel(xa_ref, xb_ref, w_ref, bias_ref, *rest, rows, width, has_res):
    if has_res:
        res_ref, o_ref = rest
    else:
        (o_ref,) = rest
    cin = xa_ref.shape[-1]
    cout = o_ref.shape[-1]
    x = jnp.concatenate([xa_ref[...], xb_ref[0:2, :, :]], axis=0)   # (rows+2, Wp, Cin)
    acc = jnp.zeros((rows * width, cout), jnp.float32)
    for ky in range(3):
        for kx in range(3):
            win = x[ky:ky + rows, kx:kx + width, :].reshape(rows * width, cin)
            acc = acc + jnp.dot(win, w_ref[ky * 3 + kx],
                                preferred_element_type=jnp.float32)
    acc = acc + bias_ref[...]
    acc = acc * jax.nn.sigmoid(acc)                                  # SiLU
    if has_res:
        acc = acc + res_ref[...].reshape(rows * width, cout).astype(jnp.float32)
    o_ref[...] = acc.astype(o_ref.dtype).reshape(rows, width, cout)


def conv3x3_s1_fused(x, w9, bias, residual=None):
    """x: (N, H, W, Cin) bf16; w9: (9, Cin, Cout) bf16; bias: (1, Cout) f32."""
    N, H, W, Cin = x.shape
    Cout = w9.shape[-1]
    # row chunk: divisor of H (>= 2), keeping the f32 accumulator small
    fitting = [d for d in range(2, H + 1)
               if H % d == 0 and d * W * Cout * 4 <= _ACC_BYTES]
    if fitting:
        R = max(fitting)
    else:
        divs = [d for d in range(2, H + 1) if H % d == 0]
        R = min(divs) if divs else H
    RC = H // R
    bottom = max(R - 1, 1)            # block index r+1 must exist; >=1 real pad row
    xp = jnp.pad(x.astype(jnp.bfloat16), ((0, 0), (1, bottom), (1, 1), (0, 0)))
    Wp = W + 2

    in_specs = [
        pl.BlockSpec((None, R, Wp, Cin), lambda n, r: (n, r, 0, 0)),
        pl.BlockSpec((None, R, Wp, Cin), lambda n, r: (n, r + 1, 0, 0)),
        pl.BlockSpec((9, Cin, Cout), lambda n, r: (0, 0, 0)),
        pl.BlockSpec((1, Cout), lambda n, r: (0, 0)),
    ]
    args = [xp, xp, w9.astype(jnp.bfloat16), bias.astype(jnp.float32)]
    has_res = residual is not None
    if has_res:
        args.append(residual.astype(jnp.bfloat16))
        in_specs.append(pl.BlockSpec((None, R, W, Cout), lambda n, r: (n, r, 0, 0)))

    return pl.pallas_call(
        functools.partial(_conv3x3_kernel, rows=R, width=W, has_res=has_res),
        out_shape=jax.ShapeDtypeStruct((N, H, W, Cout), jnp.bfloat16),
        grid=(N, RC),
        in_specs=in_specs,
        out_specs=pl.BlockSpec((None, R, W, Cout), lambda n, r: (n, r, 0, 0)),
        compiler_params=pltpu.CompilerParams(
            dimension_semantics=("parallel", "parallel"),
            vmem_limit_bytes=_VMEM_LIMIT),
    )(*args)


def conv3x3_im2col(x, w9, bias, stride):
    """im2col + matmul path.  Used only for the stem (Cin=3) and the two
    stride-2 fused-MBConv layers.
    TODO(synk): fold these into the direct conv kernel (strided window reads)."""
    N, H, W, Cin = x.shape
    Cout = w9.shape[-1]
    Ho = (H - 1) // stride + 1
    Wo = (W - 1) // stride + 1
    xp = jnp.pad(x.astype(jnp.bfloat16), ((0, 0), (1, 1), (1, 1), (0, 0)))
    cols = []
    for ky in range(3):
        for kx in range(3):
            cols.append(xp[:, ky:ky + (Ho - 1) * stride + 1:stride,
                              kx:kx + (Wo - 1) * stride + 1:stride, :])
    patches = jnp.concatenate(cols, axis=-1).reshape(N * Ho * Wo, 9 * Cin)
    wmat = w9.reshape(9 * Cin, Cout)
    out = matmul_bias_act(patches, wmat, bias, act="silu")
    return out.reshape(N, Ho, Wo, Cout)


# --------------------------------------------------------------------------- #
# Depthwise 3x3 + bias + SiLU, fused SE global pool (sum) output.
# Stride-1: whole padded image per grid step.
# Stride-2: computed directly on parity-split views (no wasted MACs/writes).
# --------------------------------------------------------------------------- #

def _dw_s1_kernel(x_ref, w_ref, b_ref, o_ref, pool_ref, *, ho, wo):
    c = x_ref.shape[-1]
    x = x_ref[...].astype(jnp.float32)
    acc = jnp.zeros((ho, wo, c), jnp.float32)
    for ky in range(3):
        for kx in range(3):
            tap = w_ref[ky * 3 + kx].reshape(1, 1, c)
            acc = acc + x[ky:ky + ho, kx:kx + wo, :] * tap
    acc = acc + b_ref[...].reshape(1, 1, c)
    acc = acc * jax.nn.sigmoid(acc)
    o_ref[...] = acc.astype(o_ref.dtype).reshape(ho * wo, c)
    pool_ref[...] = jnp.sum(acc, axis=(0, 1)).reshape(1, c)


def depthwise3x3_s1(x, w9, bias):
    """x: (N, H, W, C) bf16 -> (out (N, H*W, C) bf16, channel-sum (N, 1, C) f32)."""
    N, H, W, C = x.shape
    # TODO(synk): the spatial zero-pad is still an XLA glue copy of the expanded
    # activation; an in-kernel pad would remove one HBM pass per MB block.
    xp = jnp.pad(x.astype(jnp.bfloat16), ((0, 0), (1, 1), (1, 1), (0, 0)))
    Hp, Wp = H + 2, W + 2
    return pl.pallas_call(
        functools.partial(_dw_s1_kernel, ho=H, wo=W),
        out_shape=(jax.ShapeDtypeStruct((N, H * W, C), jnp.bfloat16),
                   jax.ShapeDtypeStruct((N, 1, C), jnp.float32)),
        grid=(N,),
        in_specs=[
            pl.BlockSpec((None, Hp, Wp, C), lambda n: (n, 0, 0, 0)),
            pl.BlockSpec((9, C), lambda n: (0, 0)),
            pl.BlockSpec((1, C), lambda n: (0, 0)),
        ],
        out_specs=(pl.BlockSpec((None, H * W, C), lambda n: (n, 0, 0)),
                   pl.BlockSpec((None, 1, C), lambda n: (n, 0, 0))),
        compiler_params=pltpu.CompilerParams(
            dimension_semantics=("parallel",), vmem_limit_bytes=_VMEM_LIMIT),
    )(xp, w9.astype(jnp.float32), bias.astype(jnp.float32))


def _dw_s2_kernel(xee_ref, xeo_ref, xoe_ref, xoo_ref, w_ref, b_ref,
                  o_ref, pool_ref, *, ho, wo):
    c = xee_ref.shape[-1]
    views = ((xee_ref[...].astype(jnp.float32), xeo_ref[...].astype(jnp.float32)),
             (xoe_ref[...].astype(jnp.float32), xoo_ref[...].astype(jnp.float32)))
    acc = jnp.zeros((ho, wo, c), jnp.float32)
    for ky in range(3):
        for kx in range(3):
            v = views[ky % 2][kx % 2]
            tap = w_ref[ky * 3 + kx].reshape(1, 1, c)
            acc = acc + v[ky // 2:ky // 2 + ho, kx // 2:kx // 2 + wo, :] * tap
    acc = acc + b_ref[...].reshape(1, 1, c)
    acc = acc * jax.nn.sigmoid(acc)
    o_ref[...] = acc.astype(o_ref.dtype).reshape(ho * wo, c)
    pool_ref[...] = jnp.sum(acc, axis=(0, 1)).reshape(1, c)


def depthwise3x3_s2(x, w9, bias):
    """Stride-2 depthwise; the parity split is one glue pass, the kernel does
    exactly Ho*Wo MACs per tap and 1x output writes."""
    N, H, W, C = x.shape
    Ho = (H - 1) // 2 + 1
    Wo = (W - 1) // 2 + 1
    ph = 2 + (H % 2)
    pw = 2 + (W % 2)
    xp = jnp.pad(x.astype(jnp.bfloat16), ((0, 0), (1, ph - 1), (1, pw - 1), (0, 0)))
    Hh = (H + ph) // 2
    Wh = (W + pw) // 2
    xee = xp[:, 0::2, 0::2, :]
    xeo = xp[:, 0::2, 1::2, :]
    xoe = xp[:, 1::2, 0::2, :]
    xoo = xp[:, 1::2, 1::2, :]
    view_spec = pl.BlockSpec((None, Hh, Wh, C), lambda n: (n, 0, 0, 0))
    return pl.pallas_call(
        functools.partial(_dw_s2_kernel, ho=Ho, wo=Wo),
        out_shape=(jax.ShapeDtypeStruct((N, Ho * Wo, C), jnp.bfloat16),
                   jax.ShapeDtypeStruct((N, 1, C), jnp.float32)),
        grid=(N,),
        in_specs=[view_spec, view_spec, view_spec, view_spec,
                  pl.BlockSpec((9, C), lambda n: (0, 0)),
                  pl.BlockSpec((1, C), lambda n: (0, 0))],
        out_specs=(pl.BlockSpec((None, Ho * Wo, C), lambda n: (n, 0, 0)),
                   pl.BlockSpec((None, 1, C), lambda n: (n, 0, 0))),
        compiler_params=pltpu.CompilerParams(
            dimension_semantics=("parallel",), vmem_limit_bytes=_VMEM_LIMIT),
    )(xee, xeo, xoe, xoo, w9.astype(jnp.float32), bias.astype(jnp.float32))


# --------------------------------------------------------------------------- #
# Squeeze-Excitation gate (tiny) + SE-gated project matmul
# --------------------------------------------------------------------------- #

def _se_fc_kernel(p_ref, w1_ref, b1_ref, w2_ref, b2_ref, s_ref, *, inv_hw):
    pooled = p_ref[...] * inv_hw                                       # (N, C)
    h = jnp.dot(pooled, w1_ref[...], preferred_element_type=jnp.float32) + b1_ref[...]
    h = h * jax.nn.sigmoid(h)                                          # SiLU
    h = jnp.dot(h, w2_ref[...], preferred_element_type=jnp.float32) + b2_ref[...]
    s_ref[...] = jax.nn.sigmoid(h)


def se_gate(pooled, w1, b1, w2, b2, inv_hw):
    """pooled: (N, 1, C) f32 channel sums -> SE gate (N, 1, C) f32."""
    N, _, C = pooled.shape
    sq = w1.shape[-1]
    gate = pl.pallas_call(
        functools.partial(_se_fc_kernel, inv_hw=inv_hw),
        out_shape=jax.ShapeDtypeStruct((N, C), jnp.float32),
        grid=(1,),
        in_specs=[
            pl.BlockSpec((N, C), lambda i: (0, 0)),
            pl.BlockSpec((C, sq), lambda i: (0, 0)),
            pl.BlockSpec((1, sq), lambda i: (0, 0)),
            pl.BlockSpec((sq, C), lambda i: (0, 0)),
            pl.BlockSpec((1, C), lambda i: (0, 0)),
        ],
        out_specs=pl.BlockSpec((N, C), lambda i: (0, 0)),
        compiler_params=pltpu.CompilerParams(vmem_limit_bytes=_VMEM_LIMIT),
    )(pooled.reshape(N, C), w1, b1, w2, b2)
    return gate.reshape(N, 1, C)


def _proj_kernel(a_ref, s_ref, b_ref, bias_ref, *rest, has_res):
    if has_res:
        res_ref, o_ref, acc_ref = rest
    else:
        o_ref, acc_ref = rest
    k = pl.program_id(2)

    @pl.when(k == 0)
    def _():
        acc_ref[...] = jnp.zeros_like(acc_ref)

    a = (a_ref[...].astype(jnp.float32) * s_ref[...]).astype(jnp.bfloat16)
    acc_ref[...] += jnp.dot(a, b_ref[...], preferred_element_type=jnp.float32)

    @pl.when(k == pl.num_programs(2) - 1)
    def _():
        acc = acc_ref[...] + bias_ref[...]
        if has_res:
            acc = acc + res_ref[...].astype(jnp.float32)
        o_ref[...] = acc.astype(o_ref.dtype)


def project_se_matmul(a, gate, b, bias, residual=None):
    """out[n] = (a[n] * gate[n]) @ b + bias [+ residual[n]].
    a: (N, Mi, K) bf16, gate: (N, 1, K) f32, b: (K, Cout) bf16, bias: (1, Cout)."""
    N, Mi, K = a.shape
    Cout = b.shape[-1]
    tn = _pick_tile(Cout, 512, (128,)) if Cout % 128 == 0 else Cout
    tk = _pick_tile(K, 512, (128,)) if K % 128 == 0 else K

    args = [a.astype(jnp.bfloat16), gate.astype(jnp.float32),
            b.astype(jnp.bfloat16), bias.astype(jnp.float32)]
    in_specs = [
        pl.BlockSpec((None, Mi, tk), lambda n, j, k: (n, 0, k)),
        pl.BlockSpec((None, 1, tk), lambda n, j, k: (n, 0, k)),
        pl.BlockSpec((tk, tn), lambda n, j, k: (k, j)),
        pl.BlockSpec((1, tn), lambda n, j, k: (0, j)),
    ]
    has_res = residual is not None
    if has_res:
        args.append(residual.astype(jnp.bfloat16))
        in_specs.append(pl.BlockSpec((None, Mi, tn), lambda n, j, k: (n, 0, j)))

    return pl.pallas_call(
        functools.partial(_proj_kernel, has_res=has_res),
        out_shape=jax.ShapeDtypeStruct((N, Mi, Cout), jnp.bfloat16),
        grid_spec=pltpu.PrefetchScalarGridSpec(
            num_scalar_prefetch=0,
            grid=(N, Cout // tn, K // tk),
            in_specs=in_specs,
            out_specs=pl.BlockSpec((None, Mi, tn), lambda n, j, k: (n, 0, j)),
            scratch_shapes=[pltpu.VMEM((Mi, tn), jnp.float32)],
        ),
        compiler_params=pltpu.CompilerParams(
            dimension_semantics=("parallel", "parallel", "arbitrary"),
            vmem_limit_bytes=_VMEM_LIMIT),
    )(*args)


# --------------------------------------------------------------------------- #
# Global average pool (head)
# --------------------------------------------------------------------------- #

def _pool_kernel(x_ref, o_ref, *, inv_hw):
    o_ref[...] = jnp.sum(x_ref[...].astype(jnp.float32), axis=0,
                         keepdims=True) * inv_hw


def global_avg_pool(x):
    """x: (N, HW, C) bf16 -> (N, C) f32."""
    N, HW, C = x.shape
    return pl.pallas_call(
        functools.partial(_pool_kernel, inv_hw=1.0 / HW),
        out_shape=jax.ShapeDtypeStruct((N, C), jnp.float32),
        grid=(N,),
        in_specs=[pl.BlockSpec((None, HW, C), lambda n: (n, 0, 0))],
        out_specs=pl.BlockSpec((1, C), lambda n: (n, 0)),
        compiler_params=pltpu.CompilerParams(
            dimension_semantics=("parallel",), vmem_limit_bytes=_VMEM_LIMIT),
    )(x)


# --------------------------------------------------------------------------- #
# Block-level jitted pieces (shape-cached: identical blocks share one compile)
# --------------------------------------------------------------------------- #

@functools.partial(jax.jit, static_argnames=("stride", "use_res", "expand"))
def fused_block_jit(x, w1, b1, w2, b2, *, stride, use_res, expand):
    N, H, W, _ = x.shape
    if stride == 1 and H >= 2:
        res = x if (expand == 1 and use_res) else None
        h = conv3x3_s1_fused(x, w1, b1, residual=res)
    else:
        h = conv3x3_im2col(x, w1, b1, stride)
    if expand == 1:
        return h
    Nb, Ho, Wo, Ce = h.shape
    res2 = x.reshape(Nb * Ho * Wo, -1) if use_res else None
    out = matmul_bias_act(h.reshape(Nb * Ho * Wo, Ce), w2, b2,
                          act="none", residual=res2)
    return out.reshape(Nb, Ho, Wo, -1)


@functools.partial(jax.jit, static_argnames=("stride", "use_res"))
def mb_block_jit(x, we, be, wd, bd, wse1, bse1, wse2, bse2, wp, bp,
                 *, stride, use_res):
    N, H, W, Cin = x.shape
    cexp = we.shape[-1]
    h = matmul_bias_act(x.reshape(N * H * W, Cin), we, be, act="silu")
    h = h.reshape(N, H, W, cexp)
    if stride == 1:
        dw, pooled = depthwise3x3_s1(h, wd, bd)
        Ho, Wo = H, W
    else:
        dw, pooled = depthwise3x3_s2(h, wd, bd)
        Ho = (H - 1) // 2 + 1
        Wo = (W - 1) // 2 + 1
    gate = se_gate(pooled, wse1, bse1, wse2, bse2, inv_hw=1.0 / (Ho * Wo))
    res = x.reshape(N, H * W, Cin) if use_res else None
    out = project_se_matmul(dw, gate, wp, bp, residual=res)
    return out.reshape(N, Ho, Wo, -1)


@jax.jit
def stem_jit(x_nchw, w9, b):
    x = jnp.transpose(x_nchw, (0, 2, 3, 1)).astype(jnp.bfloat16)   # NCHW -> NHWC
    return conv3x3_im2col(x, w9, b, stride=2)


@jax.jit
def head_jit(x, wh, bh, fc_w, fc_b):
    N, H, W, C = x.shape
    h = matmul_bias_act(x.reshape(N * H * W, C), wh, bh, act="silu")
    p = global_avg_pool(h.reshape(N, H * W, -1))
    # Dropout(p=0.3) is identity in eval mode.
    return matmul_bias_act(p, fc_w, fc_b, act="none", out_dtype=jnp.float32)


# --------------------------------------------------------------------------- #
# Parameters (deterministic init, eval-mode BN folded, weights pre-packed)
# --------------------------------------------------------------------------- #

BN_EPS = 1e-3
# (block_type, expand_ratio, kernel, stride, in_c, out_c, num_layers) -- V2-M
CFG = [
    ("fused", 1, 3, 1, 24, 24, 3),
    ("fused", 4, 3, 2, 24, 48, 5),
    ("fused", 4, 3, 2, 48, 80, 5),
    ("mb",    4, 3, 2, 80, 160, 7),
    ("mb",    6, 3, 1, 160, 176, 14),
    ("mb",    6, 3, 2, 176, 304, 18),
    ("mb",    6, 3, 2, 304, 512, 5),
]
LAST_CHANNEL = 1280
NUM_CLASSES = 4


class KeyGen:
    def __init__(self, key):
        self.key = key

    def next(self):
        self.key, sub = jax.random.split(self.key)
        return sub


def kaiming(key, shape, fan_out):
    std = (2.0 / fan_out) ** 0.5
    return jax.random.normal(key, shape, jnp.float32) * std


def fold_bn(w, gamma, beta, mean, var, eps=BN_EPS):
    scale = gamma / jnp.sqrt(var + eps)
    return w * scale[:, None, None, None], beta - mean * scale


def init_conv_bn(kg, cin, cout, k, groups=1):
    w = kaiming(kg.next(), (cout, cin // groups, k, k), cout * k * k // groups)
    ones = jnp.ones((cout,), jnp.float32)
    zeros = jnp.zeros((cout,), jnp.float32)
    return fold_bn(w, ones, zeros, zeros, ones)


def conv3x3_pack(w, b):
    cout, cin = w.shape[0], w.shape[1]
    w9 = jnp.transpose(w, (2, 3, 1, 0)).reshape(9, cin, cout)
    return w9.astype(jnp.bfloat16), b.reshape(1, -1).astype(jnp.float32)


def conv1x1_pack(w, b):
    cout, cin = w.shape[0], w.shape[1]
    return (w.reshape(cout, cin).T.astype(jnp.bfloat16),
            b.reshape(1, -1).astype(jnp.float32))


def dw_pack(w, b):
    c = w.shape[0]
    w9 = jnp.transpose(w[:, 0, :, :], (1, 2, 0)).reshape(9, c)
    return w9.astype(jnp.float32), b.reshape(1, -1).astype(jnp.float32)


def build_params(key):
    kg = KeyGen(key)
    params = {"stem": conv3x3_pack(*init_conv_bn(kg, 3, 24, 3))}
    blocks = []
    for btype, expand, k, stride, cin_stage, cout, layers in CFG:
        for li in range(layers):
            cin = cin_stage if li == 0 else cout
            s = stride if li == 0 else 1
            exp_c = cin * expand
            p = {"type": btype, "stride": s, "cin": cin, "cout": cout,
                 "expand": expand}
            if btype == "fused":
                if expand == 1:
                    p["w1"], p["b1"] = conv3x3_pack(*init_conv_bn(kg, cin, cout, k))
                    p["w2"], p["b2"] = None, None
                else:
                    p["w1"], p["b1"] = conv3x3_pack(*init_conv_bn(kg, cin, exp_c, k))
                    p["w2"], p["b2"] = conv1x1_pack(*init_conv_bn(kg, exp_c, cout, 1))
            else:
                sq = max(1, cin // 4)
                p["we"], p["be"] = conv1x1_pack(*init_conv_bn(kg, cin, exp_c, 1))
                p["wd"], p["bd"] = dw_pack(*init_conv_bn(kg, exp_c, exp_c, 3,
                                                         groups=exp_c))
                wse1 = kaiming(kg.next(), (sq, exp_c, 1, 1), sq)
                wse2 = kaiming(kg.next(), (exp_c, sq, 1, 1), exp_c)
                p["wse1"] = wse1.reshape(sq, exp_c).T.astype(jnp.float32)
                p["bse1"] = jnp.zeros((1, sq), jnp.float32)
                p["wse2"] = wse2.reshape(exp_c, sq).T.astype(jnp.float32)
                p["bse2"] = jnp.zeros((1, exp_c), jnp.float32)
                p["wp"], p["bp"] = conv1x1_pack(*init_conv_bn(kg, exp_c, cout, 1))
            blocks.append(p)
    params["blocks"] = blocks
    params["head"] = conv1x1_pack(*init_conv_bn(kg, 512, LAST_CHANNEL, 1))
    r = 1.0 / (LAST_CHANNEL ** 0.5)
    fc_w = jax.random.uniform(kg.next(), (NUM_CLASSES, LAST_CHANNEL),
                              jnp.float32, -r, r)
    params["fc_w"] = fc_w.T.astype(jnp.bfloat16)
    params["fc_b"] = jnp.zeros((1, NUM_CLASSES), jnp.float32)
    return params


# --------------------------------------------------------------------------- #
# Forward pass
# --------------------------------------------------------------------------- #

def forward(params, x_nchw):
    x = stem_jit(x_nchw, *params["stem"])
    for p in params["blocks"]:
        use_res = (p["stride"] == 1 and p["cin"] == p["cout"])
        if p["type"] == "fused":
            x = fused_block_jit(x, p["w1"], p["b1"], p["w2"], p["b2"],
                                stride=p["stride"], use_res=use_res,
                                expand=p["expand"])
        else:
            x = mb_block_jit(x, p["we"], p["be"], p["wd"], p["bd"],
                             p["wse1"], p["bse1"], p["wse2"], p["bse2"],
                             p["wp"], p["bp"],
                             stride=p["stride"], use_res=use_res)
    return head_jit(x, params["head"][0], params["head"][1],
                    params["fc_w"], params["fc_b"])


# TODO(synk): pretrained ImageNet weights cannot be loaded in-script; parameters use the
# same eval-mode semantics (BN folded, dropout/stochastic-depth identity) with random init.

if __name__ == "__main__":
    key = jax.random.PRNGKey(0)
    pkey, xkey = jax.random.split(key)
    params = build_params(pkey)
    x = jax.random.normal(xkey, (2, 3, 32, 32), jnp.float32)   # small NCHW input
    out = forward(params, x)
    out = jax.block_until_ready(out)
    assert out.shape == (2, NUM_CLASSES)
    assert bool(jnp.all(jnp.isfinite(out)))
    print("KERNEL_OK")
</pallas_src>

<mosaic_0001>
module attributes {stable_mosaic.version = 11 : i64} {
  func.func @_mm_kernel(%arg0: i32, %arg1: i32, %arg2: i32, %arg3: memref<512x27xbf16, #tpu.memory_space<vmem>>, %arg4: memref<27x24xbf16, #tpu.memory_space<vmem>>, %arg5: memref<1x24xf32, #tpu.memory_space<vmem>>, %arg6: memref<512x24xbf16, #tpu.memory_space<vmem>>, %arg7: memref<512x24xf32, #tpu.memory_space<vmem>>) attributes {dimension_semantics = [#tpu.dimension_semantics<parallel>, #tpu.dimension_semantics<parallel>, #tpu.dimension_semantics<arbitrary>], iteration_bounds = array<i64: 1, 1, 1>, scalar_prefetch = 0 : i64, scratch_operands = 1 : i64, tpu.core_type = #tpu.core_type<tc>, window_params = [{transform_indices = @transform_0, window_bounds = array<i64: 512, 27>}, {transform_indices = @transform_1, window_bounds = array<i64: 27, 24>}, {transform_indices = @transform_2, window_bounds = array<i64: 1, 24>}, {transform_indices = @transform_3, window_bounds = array<i64: 512, 24>}]} {
    %c0_i32 = arith.constant 0 : i32
    %0 = arith.cmpi eq, %arg2, %c0_i32 : i32
    %1 = arith.extui %0 : i1 to i32
    %c0_i32_0 = arith.constant 0 : i32
    %2 = arith.cmpi ne, %1, %c0_i32_0 : i32
    scf.if %2 {
      %cst_10 = arith.constant 0.000000e+00 : f32
      %12 = vector.broadcast %cst_10 : f32 to vector<512x24xf32>
      %c0_11 = arith.constant 0 : index
      %c0_12 = arith.constant 0 : index
      %13 = vector.load %arg7[%c0_11, %c0_12] : memref<512x24xf32, #tpu.memory_space<vmem>>, vector<512x24xf32>
      tpu.vector_store %arg7[%c0_11, %c0_12], %12 {strides = array<i32>} : memref<512x24xf32, #tpu.memory_space<vmem>>, vector<512x24xf32>,
    } else {
    }
    %c0 = arith.constant 0 : index
    %c0_1 = arith.constant 0 : index
    %3 = vector.load %arg7[%c0, %c0_1] : memref<512x24xf32, #tpu.memory_space<vmem>>, vector<512x24xf32>
    %c0_2 = arith.constant 0 : index
    %c0_3 = arith.constant 0 : index
    %4 = vector.load %arg3[%c0_2, %c0_3] : memref<512x27xbf16, #tpu.memory_space<vmem>>, vector<512x27xbf16>
    %c0_4 = arith.constant 0 : index
    %c0_5 = arith.constant 0 : index
    %5 = vector.load %arg4[%c0_4, %c0_5] : memref<27x24xbf16, #tpu.memory_space<vmem>>, vector<27x24xbf16>
    %cst = arith.constant dense<0.000000e+00> : vector<512x24xf32>
    %6 = tpu.matmul %4, %5, %cst {dimension_numbers = #tpu.dot_dimension_numbers<[1], [0], [0], [1], [0, 0, 1, 1], [], []>} : vector<512x27xbf16>, vector<27x24xbf16>, vector<512x24xf32> -> vector<512x24xf32>
    %7 = arith.addf %3, %6 : vector<512x24xf32>
    %c0_6 = arith.constant 0 : index
    %c0_7 = arith.constant 0 : index
    %8 = vector.load %arg7[%c0_6, %c0_7] : memref<512x24xf32, #tpu.memory_space<vmem>>, vector<512x24xf32>
    tpu.vector_store %arg7[%c0_6, %c0_7], %7 {strides = array<i32>} : memref<512x24xf32, #tpu.memory_space<vmem>>, vector<512x24xf32>,
    %c0_i32_8 = arith.constant 0 : i32
    %9 = arith.cmpi eq, %arg2, %c0_i32_8 : i32
    %10 = arith.extui %9 : i1 to i32
    %c0_i32_9 = arith.constant 0 : i32
    %11 = arith.cmpi ne, %10, %c0_i32_9 : i32
    scf.if %11 {
      %c0_10 = arith.constant 0 : index
      %c0_11 = arith.constant 0 : index
      %12 = vector.load %arg7[%c0_10, %c0_11] : memref<512x24xf32, #tpu.memory_space<vmem>>, vector<512x24xf32>
      %c0_12 = arith.constant 0 : index
      %c0_13 = arith.constant 0 : index
      %13 = vector.load %arg5[%c0_12, %c0_13] : memref<1x24xf32, #tpu.memory_space<vmem>>, vector<1x24xf32>
      %14 = vector.broadcast %13 : vector<1x24xf32> to vector<512x24xf32>
      %15 = arith.addf %12, %14 : vector<512x24xf32>
      %16 = arith.negf %15 : vector<512x24xf32>
      %17 = math.exp %16 : vector<512x24xf32>
      %cst_14 = arith.constant 1.000000e+00 : f32
      %18 = vector.broadcast %cst_14 : f32 to vector<512x24xf32>
      %19 = arith.addf %18, %17 : vector<512x24xf32>
      %20 = arith.divf %18, %19 : vector<512x24xf32>
      %21 = arith.mulf %15, %20 : vector<512x24xf32>
      %22 = arith.truncf %21 : vector<512x24xf32> to vector<512x24xbf16>
      %c0_15 = arith.constant 0 : index
      %c0_16 = arith.constant 0 : index
      %23 = vector.load %arg6[%c0_15, %c0_16] : memref<512x24xbf16, #tpu.memory_space<vmem>>, vector<512x24xbf16>
      tpu.vector_store %arg6[%c0_15, %c0_16], %22 {strides = array<i32>} : memref<512x24xbf16, #tpu.memory_space<vmem>>, vector<512x24xbf16>,
    } else {
    }
    return
  }
  func.func @transform_0(%arg0: i32, %arg1: i32, %arg2: i32) -> (i32, i32) {
    %c0_i32 = arith.constant 0 : i32
    return %arg0, %arg2 : i32, i32
  }
  func.func @transform_1(%arg0: i32, %arg1: i32, %arg2: i32) -> (i32, i32) {
    %c0_i32 = arith.constant 0 : i32
    return %arg2, %arg1 : i32, i32
  }
  func.func @transform_2(%arg0: i32, %arg1: i32, %arg2: i32) -> (i32, i32) {
    %c0_i32 = arith.constant 0 : i32
    %c0_i32_0 = arith.constant 0 : i32
    return %c0_i32, %arg1 : i32, i32
  }
  func.func @transform_3(%arg0: i32, %arg1: i32, %arg2: i32) -> (i32, i32) {
    %c0_i32 = arith.constant 0 : i32
    return %arg0, %arg1 : i32, i32
  }
}

</mosaic_0001>

<llo_original>
// kernel: stem_jit.1
$region0: #{stem_jit.1}
  #allocation0 [shape = 'u32[]', space=smem, size = 0x4, offset = 0x4, fixed_abs, tag = 'smem constant byte address 0x4 - core index']
  #allocation1 [shape = 'u32[144,128]{1,0:T(1,128)}', space=vmem, size = 0x12000, scoped, tag = 'internal scratch']
  #allocation2 [shape = 'f32[512,24]{1,0:T(8,128)}', space=vmem, size = 0x40000, scoped, tag = 'scratch operand']
  %s0 = inlined_call_operand.hbm [shape: bf16[512,27], index: 0, kind: input, shape index: {}]
  %s1 = inlined_call_operand.hbm [shape: bf16[27,24], index: 1, kind: input, shape index: {}]
  %s2 = inlined_call_operand.hbm [shape: f32[1,24], index: 2, kind: input, shape index: {}]
  %s3 = inlined_call_operand.hbm [shape: bf16[512,24], index: 3, kind: output, shape index: {}]
  %s4 = sld [smem:[#allocation0]]
  $region42: #{stem_jit.1} parent=0
    _
  %s6 = ssub.s32 1, %s4
  %s7 = scalar_select 0, %s6, %s4
  $region1: #{stem_jit.1} parent=0
    #allocation3 [shape = 'u8[131072]{0}', space=vmem, size = 0x20000, scoped, tag = 'input window, operand 0, single buffered']
    #allocation4 [shape = 's32[1]{0}', space=sflag, size = 0x4, scoped, tag = 'scoped memory for stem_jit.1']
    #allocation5 [shape = 's32[1]{0}', space=sflag, size = 0x4, scoped, tag = 'scoped memory for stem_jit.1']
    #allocation6 [shape = 'u8[8192]{0}', space=vmem, size = 0x2000, scoped, tag = 'input window, operand 1, single buffered']
    #allocation7 [shape = 's32[1]{0}', space=sflag, size = 0x4, scoped, tag = 'scoped memory for stem_jit.1']
    #allocation8 [shape = 'u8[512]{0}', space=vmem, size = 0x400, scoped, tag = 'input window, operand 2, single buffered']
    #allocation9 [shape = 'u8[131072]{0}', space=vmem, size = 0x20000, scoped, tag = 'output window, operand 0, single buffered']
    %8 = vsyncpa [#allocation4], 0
    %9 = vsyncpa [#allocation7], 0
    %10 = vsyncpa [#allocation5], 0
    // Predicated region
    $region2: #{stem_jit.1} parent=1 // pred_check
      _
    $region3: #{stem_jit.1} parent=1 // pred_check_branch
      %12 = sbr.rel (0) target = $region5
    $region4: #{stem_jit.1} parent=1 // pred_region
      %s14 = ssub.s32 4096, 4096
      %15 = vsyncadd [#allocation4], %s14
      %s16 = sshll.u32 [#allocation3], 4
      %s17 = int_to_ptr.vmem [resolvable:$true] %s16
      %22 = dma.hbm_to_vmem [thread:$0]  %s0, 4096, %s17, [#allocation4], 64, 64, 4
    $region5: #{stem_jit.1} parent=1 // pred_fallthru
      _
    // Predicated region
    $region6: #{stem_jit.1} parent=1 // pred_check
      _
    $region7: #{stem_jit.1} parent=1 // pred_check_branch
      %24 = sbr.rel (0) target = $region9
    $region8: #{stem_jit.1} parent=1 // pred_region
      %s26 = ssub.s32 256, 256
      %27 = vsyncadd [#allocation7], %s26
      %s28 = sshll.u32 [#allocation6], 4
      %s29 = int_to_ptr.vmem [resolvable:$true] %s28
      %34 = dma.hbm_to_vmem [thread:$0]  %s1, 256, %s29, [#allocation7], 64, 64, 4
    $region9: #{stem_jit.1} parent=1 // pred_fallthru
      _
    // Predicated region
    $region10: #{stem_jit.1} parent=1 // pred_check
      _
    $region11: #{stem_jit.1} parent=1 // pred_check_branch
      %36 = sbr.rel (0) target = $region13
    $region12: #{stem_jit.1} parent=1 // pred_region
      %s38 = ssub.s32 16, 16
      %39 = vsyncadd [#allocation7], %s38
      %s41 = sshll.u32 [#allocation8], 4
      %s42 = int_to_ptr.vmem [resolvable:$true] %s41
      %44 = dma.hbm_to_vmem [thread:$0]  %s2, 16, %s42, [#allocation7]
    $region13: #{stem_jit.1} parent=1 // pred_fallthru
      _
    // Predicated region
    $region14: #{stem_jit.1} parent=1 // pred_check
      _
    $region15: #{stem_jit.1} parent=1 // pred_check_branch
      %46 = sbr.rel (0) target = $region17
    $region16: #{stem_jit.1} parent=1 // pred_region
      %47 = dma.done [#allocation4], 4096
    $region17: #{stem_jit.1} parent=1 // pred_fallthru
      _
    // Predicated region
    $region18: #{stem_jit.1} parent=1 // pred_check
      _
    $region19: #{stem_jit.1} parent=1 // pred_check_branch
      %49 = sbr.rel (0) target = $region21
    $region20: #{stem_jit.1} parent=1 // pred_region
      %50 = dma.done [#allocation7], 256
    $region21: #{stem_jit.1} parent=1 // pred_fallthru
      _
    // Predicated region
    $region22: #{stem_jit.1} parent=1 // pred_check
      _
    $region23: #{stem_jit.1} parent=1 // pred_check_branch
      %52 = sbr.rel (0) target = $region25
    $region24: #{stem_jit.1} parent=1 // pred_region
      %53 = dma.done [#allocation7], 16
    $region25: #{stem_jit.1} parent=1 // pred_fallthru
      _
    %p55 = scmp.eq.s32.totalorder 0, 0
    // Predicated region
    $region26: #{stem_jit.1} parent=1 // pred_check
      %p56 = pneg %p55
    $region27: #{stem_jit.1} parent=1 // pred_check_branch
      %58 = sbr.rel (%p56) target = $region29
    $region28: #{stem_jit.1} parent=1 // pred_region
      %vm59 = vcmask 195584
      %60 = vst.msk [vmem:[#allocation2] sm:$0xff] %vm59, 0.0
      %61 = vst.msk [vmem:[#allocation2 + $0x8] sm:$0xff] %vm59, 0.0
      %62 = vst.msk [vmem:[#allocation2 + $0x10] sm:$0xff] %vm59, 0.0
      %63 = vst.msk [vmem:[#allocation2 + $0x18] sm:$0xff] %vm59, 0.0
      %64 = vst.msk [vmem:[#allocation2 + $0x20] sm:$0xff] %vm59, 0.0
      %65 = vst.msk [vmem:[#allocation2 + $0x28] sm:$0xff] %vm59, 0.0
      %66 = vst.msk [vmem:[#allocation2 + $0x30] sm:$0xff] %vm59, 0.0
      %67 = vst.msk [vmem:[#allocation2 + $0x38] sm:$0xff] %vm59, 0.0
      %68 = vst.msk [vmem:[#allocation2 + $0x40] sm:$0xff] %vm59, 0.0
      %69 = vst.msk [vmem:[#allocation2 + $0x48] sm:$0xff] %vm59, 0.0
      %70 = vst.msk [vmem:[#allocation2 + $0x50] sm:$0xff] %vm59, 0.0
      %71 = vst.msk [vmem:[#allocation2 + $0x58] sm:$0xff] %vm59, 0.0
      %72 = vst.msk [vmem:[#allocation2 + $0x60] sm:$0xff] %vm59, 0.0
      %73 = vst.msk [vmem:[#allocation2 + $0x68] sm:$0xff] %vm59, 0.0
      %74 = vst.msk [vmem:[#allocation2 + $0x70] sm:$0xff] %vm59, 0.0
      %75 = vst.msk [vmem:[#allocation2 + $0x78] sm:$0xff] %vm59, 0.0
      %76 = vst.msk [vmem:[#allocation2 + $0x80] sm:$0xff] %vm59, 0.0
      %77 = vst.msk [vmem:[#allocation2 + $0x88] sm:$0xff] %vm59, 0.0
      %78 = vst.msk [vmem:[#allocation2 + $0x90] sm:$0xff] %vm59, 0.0
      %79 = vst.msk [vmem:[#allocation2 + $0x98] sm:$0xff] %vm59, 0.0
      %80 = vst.msk [vmem:[#allocation2 + $0xa0] sm:$0xff] %vm59, 0.0
      %81 = vst.msk [vmem:[#allocation2 + $0xa8] sm:$0xff] %vm59, 0.0
      %82 = vst.msk [vmem:[#allocation2 + $0xb0] sm:$0xff] %vm59, 0.0
      %83 = vst.msk [vmem:[#allocation2 + $0xb8] sm:$0xff] %vm59, 0.0
      %84 = vst.msk [vmem:[#allocation2 + $0xc0] sm:$0xff] %vm59, 0.0
      %85 = vst.msk [vmem:[#allocation2 + $0xc8] sm:$0xff] %vm59, 0.0
      %86 = vst.msk [vmem:[#allocation2 + $0xd0] sm:$0xff] %vm59, 0.0
      %87 = vst.msk [vmem:[#allocation2 + $0xd8] sm:$0xff] %vm59, 0.0
      %88 = vst.msk [vmem:[#allocation2 + $0xe0] sm:$0xff] %vm59, 0.0
      %89 = vst.msk [vmem:[#allocation2 + $0xe8] sm:$0xff] %vm59, 0.0
      %90 = vst.msk [vmem:[#allocation2 + $0xf0] sm:$0xff] %vm59, 0.0
      %91 = vst.msk [vmem:[#allocation2 + $0xf8] sm:$0xff] %vm59, 0.0
      %92 = vst.msk [vmem:[#allocation2 + $0x100] sm:$0xff] %vm59, 0.0
      %93 = vst.msk [vmem:[#allocation2 + $0x108] sm:$0xff] %vm59, 0.0
      %94 = vst.msk [vmem:[#allocation2 + $0x110] sm:$0xff] %vm59, 0.0
      %95 = vst.msk [vmem:[#allocation2 + $0x118] sm:$0xff] %vm59, 0.0
      %96 = vst.msk [vmem:[#allocation2 + $0x120] sm:$0xff] %vm59, 0.0
      %97 = vst.msk [vmem:[#allocation2 + $0x128] sm:$0xff] %vm59, 0.0
      %98 = vst.msk [vmem:[#allocation2 + $0x130] sm:$0xff] %vm59, 0.0
      %99 = vst.msk [vmem:[#allocation2 + $0x138] sm:$0xff] %vm59, 0.0
      %100 = vst.msk [vmem:[#allocation2 + $0x140] sm:$0xff] %vm59, 0.0
      %101 = vst.msk [vmem:[#allocation2 + $0x148] sm:$0xff] %vm59, 0.0
      %102 = vst.msk [vmem:[#allocation2 + $0x150] sm:$0xff] %vm59, 0.0
      %103 = vst.msk [vmem:[#allocation2 + $0x158] sm:$0xff] %vm59, 0.0
      %104 = vst.msk [vmem:[#allocation2 + $0x160] sm:$0xff] %vm59, 0.0
      %105 = vst.msk [vmem:[#allocation2 + $0x168] sm:$0xff] %vm59, 0.0
      %106 = vst.msk [vmem:[#allocation2 + $0x170] sm:$0xff] %vm59, 0.0
      %107 = vst.msk [vmem:[#allocation2 + $0x178] sm:$0xff] %vm59, 0.0
      %108 = vst.msk [vmem:[#allocation2 + $0x180] sm:$0xff] %vm59, 0.0
      %109 = vst.msk [vmem:[#allocation2 + $0x188] sm:$0xff] %vm59, 0.0
      %110 = vst.msk [vmem:[#allocation2 + $0x190] sm:$0xff] %vm59, 0.0
      %111 = vst.msk [vmem:[#allocation2 + $0x198] sm:$0xff] %vm59, 0.0
      %112 = vst.msk [vmem:[#allocation2 + $0x1a0] sm:$0xff] %vm59, 0.0
      %113 = vst.msk [vmem:[#allocation2 + $0x1a8] sm:$0xff] %vm59, 0.0
      %114 = vst.msk [vmem:[#allocation2 + $0x1b0] sm:$0xff] %vm59, 0.0
      %115 = vst.msk [vmem:[#allocation2 + $0x1b8] sm:$0xff] %vm59, 0.0
      %116 = vst.msk [vmem:[#allocation2 + $0x1c0] sm:$0xff] %vm59, 0.0
      %117 = vst.msk [vmem:[#allocation2 + $0x1c8] sm:$0xff] %vm59, 0.0
      %118 = vst.msk [vmem:[#allocation2 + $0x1d0] sm:$0xff] %vm59, 0.0
      %119 = vst.msk [vmem:[#allocation2 + $0x1d8] sm:$0xff] %vm59, 0.0
      %120 = vst.msk [vmem:[#allocation2 + $0x1e0] sm:$0xff] %vm59, 0.0
      %121 = vst.msk [vmem:[#allocation2 + $0x1e8] sm:$0xff] %vm59, 0.0
      %122 = vst.msk [vmem:[#allocation2 + $0x1f0] sm:$0xff] %vm59, 0.0
      %123 = vst.msk [vmem:[#allocation2 + $0x1f8] sm:$0xff] %vm59, 0.0
    $region29: #{stem_jit.1} parent=1 // pred_fallthru
      _
    %v124 = vld [vmem:[#allocation2] sm:$0xff]
    %v125 = vld [vmem:[#allocation2 + $0x8] sm:$0xff]
    %v126 = vld [vmem:[#allocation2 + $0x10] sm:$0xff]
    %v127 = vld [vmem:[#allocation2 + $0x18] sm:$0xff]
    %v128 = vld [vmem:[#allocation2 + $0x20] sm:$0xff]
    %v129 = vld [vmem:[#allocation2 + $0x28] sm:$0xff]
    %v130 = vld [vmem:[#allocation2 + $0x30] sm:$0xff]
    %v131 = vld [vmem:[#allocation2 + $0x38] sm:$0xff]
    %v132 = vld [vmem:[#allocation2 + $0x40] sm:$0xff]
    %v133 = vld [vmem:[#allocation2 + $0x48] sm:$0xff]
    %v134 = vld [vmem:[#allocation2 + $0x50] sm:$0xff]
    %v135 = vld [vmem:[#allocation2 + $0x58] sm:$0xff]
    %v136 = vld [vmem:[#allocation2 + $0x60] sm:$0xff]
    %v137 = vld [vmem:[#allocation2 + $0x68] sm:$0xff]
    %v138 = vld [vmem:[#allocation2 + $0x70] sm:$0xff]
    %v139 = vld [vmem:[#allocation2 + $0x78] sm:$0xff]
    %v140 = vld [vmem:[#allocation2 + $0x80] sm:$0xff]
    %v141 = vld [vmem:[#allocation2 + $0x88] sm:$0xff]
    %v142 = vld [vmem:[#allocation2 + $0x90] sm:$0xff]
    %v143 = vld [vmem:[#allocation2 + $0x98] sm:$0xff]
    %v144 = vld [vmem:[#allocation2 + $0xa0] sm:$0xff]
    %v145 = vld [vmem:[#allocation2 + $0xa8] sm:$0xff]
    %v146 = vld [vmem:[#allocation2 + $0xb0] sm:$0xff]
    %v147 = vld [vmem:[#allocation2 + $0xb8] sm:$0xff]
    %v148 = vld [vmem:[#allocation2 + $0xc0] sm:$0xff]
    %v149 = vld [vmem:[#allocation2 + $0xc8] sm:$0xff]
    %v150 = vld [vmem:[#allocation2 + $0xd0] sm:$0xff]
    %v151 = vld [vmem:[#allocation2 + $0xd8] sm:$0xff]
    %v152 = vld [vmem:[#allocation2 + $0xe0] sm:$0xff]
    %v153 = vld [vmem:[#allocation2 + $0xe8] sm:$0xff]
    %v154 = vld [vmem:[#allocation2 + $0xf0] sm:$0xff]
    %v155 = vld [vmem:[#allocation2 + $0xf8] sm:$0xff]
    %v156 = vld [vmem:[#allocation2 + $0x100] sm:$0xff]
    %v157 = vld [vmem:[#allocation2 + $0x108] sm:$0xff]
    %v158 = vld [vmem:[#allocation2 + $0x110] sm:$0xff]
    %v159 = vld [vmem:[#allocation2 + $0x118] sm:$0xff]
    %v160 = vld [vmem:[#allocation2 + $0x120] sm:$0xff]
    %v161 = vld [vmem:[#allocation2 + $0x128] sm:$0xff]
    %v162 = vld [vmem:[#allocation2 + $0x130] sm:$0xff]
    %v163 = vld [vmem:[#allocation2 + $0x138] sm:$0xff]
    %v164 = vld [vmem:[#allocation2 + $0x140] sm:$0xff]
    %v165 = vld [vmem:[#allocation2 + $0x148] sm:$0xff]
    %v166 = vld [vmem:[#allocation2 + $0x150] sm:$0xff]
    %v167 = vld [vmem:[#allocation2 + $0x158] sm:$0xff]
    %v168 = vld [vmem:[#allocation2 + $0x160] sm:$0xff]
    %v169 = vld [vmem:[#allocation2 + $0x168] sm:$0xff]
    %v170 = vld [vmem:[#allocation2 + $0x170] sm:$0xff]
    %v171 = vld [vmem:[#allocation2 + $0x178] sm:$0xff]
    %v172 = vld [vmem:[#allocation2 + $0x180] sm:$0xff]
    %v173 = vld [vmem:[#allocation2 + $0x188] sm:$0xff]
    %v174 = vld [vmem:[#allocation2 + $0x190] sm:$0xff]
    %v175 = vld [vmem:[#allocation2 + $0x198] sm:$0xff]
    %v176 = vld [vmem:[#allocation2 + $0x1a0] sm:$0xff]
    %v177 = vld [vmem:[#allocation2 + $0x1a8] sm:$0xff]
    %v178 = vld [vmem:[#allocation2 + $0x1b0] sm:$0xff]
    %v179 = vld [vmem:[#allocation2 + $0x1b8] sm:$0xff]
    %v180 = vld [vmem:[#allocation2 + $0x1c0] sm:$0xff]
    %v181 = vld [vmem:[#allocation2 + $0x1c8] sm:$0xff]
    %v182 = vld [vmem:[#allocation2 + $0x1d0] sm:$0xff]
    %v183 = vld [vmem:[#allocation2 + $0x1d8] sm:$0xff]
    %v184 = vld [vmem:[#allocation2 + $0x1e0] sm:$0xff]
    %v185 = vld [vmem:[#allocation2 + $0x1e8] sm:$0xff]
    %v186 = vld [vmem:[#allocation2 + $0x1f0] sm:$0xff]
    %v187 = vld [vmem:[#allocation2 + $0x1f8] sm:$0xff]
    %v188 = vld [vmem:[#allocation3] sm:$0xf]
    %v189 = vld [vmem:[#allocation3 + $0x4] sm:$0xf]
    %v190 = vld [vmem:[#allocation3 + $0x8] sm:$0xf]
    %v191 = vld [vmem:[#allocation3 + $0xc] sm:$0xf]
    %v192 = vld [vmem:[#allocation3 + $0x10] sm:$0xf]
    %v193 = vld [vmem:[#allocation3 + $0x14] sm:$0xf]
    %v194 = vld [vmem:[#allocation3 + $0x18] sm:$0xf]
    %v195 = vld [vmem:[#allocation3 + $0x1c] sm:$0xf]
    %v196 = vld [vmem:[#allocation3 + $0x20] sm:$0xf]
    %v197 = vld [vmem:[#allocation3 + $0x24] sm:$0xf]
    %v198 = vld [vmem:[#allocation3 + $0x28] sm:$0xf]
    %v199 = vld [vmem:[#allocation3 + $0x2c] sm:$0xf]
    %v200 = vld [vmem:[#allocation3 + $0x30] sm:$0xf]
    %v201 = vld [vmem:[#allocation3 + $0x34] sm:$0xf]
    %v202 = vld [vmem:[#allocation3 + $0x38] sm:$0xf]
    %v203 = vld [vmem:[#allocation3 + $0x3c] sm:$0xf]
    %v204 = vld [vmem:[#allocation3 + $0x40] sm:$0xf]
    %v205 = vld [vmem:[#allocation3 + $0x44] sm:$0xf]
    %v206 = vld [vmem:[#allocation3 + $0x48] sm:$0xf]
    %v207 = vld [vmem:[#allocation3 + $0x4c] sm:$0xf]
    %v208 = vld [vmem:[#allocation3 + $0x50] sm:$0xf]
    %v209 = vld [vmem:[#allocation3 + $0x54] sm:$0xf]
    %v210 = vld [vmem:[#allocation3 + $0x58] sm:$0xf]
    %v211 = vld [vmem:[#allocation3 + $0x5c] sm:$0xf]
    %v212 = vld [vmem:[#allocation3 + $0x60] sm:$0xf]
    %v213 = vld [vmem:[#allocation3 + $0x64] sm:$0xf]
    %v214 = vld [vmem:[#allocation3 + $0x68] sm:$0xf]
    %v215 = vld [vmem:[#allocation3 + $0x6c] sm:$0xf]
    %v216 = vld [vmem:[#allocation3 + $0x70] sm:$0xf]
    %v217 = vld [vmem:[#allocation3 + $0x74] sm:$0xf]
    %v218 = vld [vmem:[#allocation3 + $0x78] sm:$0xf]
    %v219 = vld [vmem:[#allocation3 + $0x7c] sm:$0xf]
    %v220 = vld [vmem:[#allocation3 + $0x80] sm:$0xf]
    %v221 = vld [vmem:[#allocation3 + $0x84] sm:$0xf]
    %v222 = vld [vmem:[#allocation3 + $0x88] sm:$0xf]
    %v223 = vld [vmem:[#allocation3 + $0x8c] sm:$0xf]
    %v224 = vld [vmem:[#allocation3 + $0x90] sm:$0xf]
    %v225 = vld [vmem:[#allocation3 + $0x94] sm:$0xf]
    %v226 = vld [vmem:[#allocation3 + $0x98] sm:$0xf]
    %v227 = vld [vmem:[#allocation3 + $0x9c] sm:$0xf]
    %v228 = vld [vmem:[#allocation3 + $0xa0] sm:$0xf]
    %v229 = vld [vmem:[#allocation3 + $0xa4] sm:$0xf]
    %v230 = vld [vmem:[#allocation3 + $0xa8] sm:$0xf]
    %v231 = vld [vmem:[#allocation3 + $0xac] sm:$0xf]
    %v232 = vld [vmem:[#allocation3 + $0xb0] sm:$0xf]
    %v233 = vld [vmem:[#allocation3 + $0xb4] sm:$0xf]
    %v234 = vld [vmem:[#allocation3 + $0xb8] sm:$0xf]
    %v235 = vld [vmem:[#allocation3 + $0xbc] sm:$0xf]
    %v236 = vld [vmem:[#allocation3 + $0xc0] sm:$0xf]
    %v237 = vld [vmem:[#allocation3 + $0xc4] sm:$0xf]
    %v238 = vld [vmem:[#allocation3 + $0xc8] sm:$0xf]
    %v239 = vld [vmem:[#allocation3 + $0xcc] sm:$0xf]
    %v240 = vld [vmem:[#allocation3 + $0xd0] sm:$0xf]
    %v241 = vld [vmem:[#allocation3 + $0xd4] sm:$0xf]
    %v242 = vld [vmem:[#allocation3 + $0xd8] sm:$0xf]
    %v243 = vld [vmem:[#allocation3 + $0xdc] sm:$0xf]
    %v244 = vld [vmem:[#allocation3 + $0xe0] sm:$0xf]
    %v245 = vld [vmem:[#allocation3 + $0xe4] sm:$0xf]
    %v246 = vld [vmem:[#allocation3 + $0xe8] sm:$0xf]
    %v247 = vld [vmem:[#allocation3 + $0xec] sm:$0xf]
    %v248 = vld [vmem:[#allocation3 + $0xf0] sm:$0xf]
    %v249 = vld [vmem:[#allocation3 + $0xf4] sm:$0xf]
    %v250 = vld [vmem:[#allocation3 + $0xf8] sm:$0xf]
    %v251 = vld [vmem:[#allocation3 + $0xfc] sm:$0xf]
    %v252 = vld [vmem:[#allocation6] sm:$0xf]
    %v253 = vld [vmem:[#allocation6 + $0x4] sm:$0xf]
    %v254 = vld [vmem:[#allocation6 + $0x8] sm:$0xf]
    %v255 = vld [vmem:[#allocation6 + $0xc] sm:$0x3]
    %v320 = vunpack.c.l.b16 %v188
    %v321 = vunpack.c.l.b16 %v189
    %v322 = vunpack.c.l.b16 %v190
    %v323 = vunpack.c.l.b16 %v191
    %v324 = vunpack.c.l.b16 %v192
    %v325 = vunpack.c.l.b16 %v193
    %v326 = vunpack.c.l.b16 %v194
    %v327 = vunpack.c.l.b16 %v195
    %v328 = vunpack.c.l.b16 %v196
    %v329 = vunpack.c.l.b16 %v197
    %v330 = vunpack.c.l.b16 %v198
    %v331 = vunpack.c.l.b16 %v199
    %v332 = vunpack.c.l.b16 %v200
    %v333 = vunpack.c.l.b16 %v201
    %v334 = vunpack.c.l.b16 %v202
    %v335 = vunpack.c.l.b16 %v203
    %v336 = vunpack.c.l.b16 %v204
    %v337 = vunpack.c.l.b16 %v205
    %v338 = vunpack.c.l.b16 %v206
    %v339 = vunpack.c.l.b16 %v207
    %v340 = vunpack.c.l.b16 %v208
    %v341 = vunpack.c.l.b16 %v209
    %v342 = vunpack.c.l.b16 %v210
    %v343 = vunpack.c.l.b16 %v211
    %v344 = vunpack.c.l.b16 %v212
    %v345 = vunpack.c.l.b16 %v213
    %v346 = vunpack.c.l.b16 %v214
    %v347 = vunpack.c.l.b16 %v215
    %v348 = vunpack.c.l.b16 %v216
    %v349 = vunpack.c.l.b16 %v217
    %v350 = vunpack.c.l.b16 %v218
    %v351 = vunpack.c.l.b16 %v219
    %v352 = vunpack.c.l.b16 %v220
    %v353 = vunpack.c.l.b16 %v221
    %v354 = vunpack.c.l.b16 %v222
    %v355 = vunpack.c.l.b16 %v223
    %v356 = vunpack.c.l.b16 %v224
    %v357 = vunpack.c.l.b16 %v225
    %v358 = vunpack.c.l.b16 %v226
    %v359 = vunpack.c.l.b16 %v227
    %v360 = vunpack.c.l.b16 %v228
    %v361 = vunpack.c.l.b16 %v229
    %v362 = vunpack.c.l.b16 %v230
    %v363 = vunpack.c.l.b16 %v231
    %v364 = vunpack.c.l.b16 %v232
    %v365 = vunpack.c.l.b16 %v233
    %v366 = vunpack.c.l.b16 %v234
    %v367 = vunpack.c.l.b16 %v235
    %v368 = vunpack.c.l.b16 %v236
    %v369 = vunpack.c.l.b16 %v237
    %v370 = vunpack.c.l.b16 %v238
    %v371 = vunpack.c.l.b16 %v239
    %v372 = vunpack.c.l.b16 %v240
    %v373 = vunpack.c.l.b16 %v241
    %v374 = vunpack.c.l.b16 %v242
    %v375 = vunpack.c.l.b16 %v243
    %v376 = vunpack.c.l.b16 %v244
    %v377 = vunpack.c.l.b16 %v245
    %v378 = vunpack.c.l.b16 %v246
    %v379 = vunpack.c.l.b16 %v247
    %v380 = vunpack.c.l.b16 %v248
    %v381 = vunpack.c.l.b16 %v249
    %v382 = vunpack.c.l.b16 %v250
    %v383 = vunpack.c.l.b16 %v251
    %v384 = vpack.c.b16 %v321, %v320
    %v385 = vpack.c.b16 %v323, %v322
    %v386 = vpack.c.b16 %v325, %v324
    %v387 = vpack.c.b16 %v327, %v326
    %v388 = vpack.c.b16 %v329, %v328
    %v389 = vpack.c.b16 %v331, %v330
    %v390 = vpack.c.b16 %v333, %v332
    %v391 = vpack.c.b16 %v335, %v334
    %v392 = vpack.c.b16 %v337, %v336
    %v393 = vpack.c.b16 %v339, %v338
    %v394 = vpack.c.b16 %v341, %v340
    %v395 = vpack.c.b16 %v343, %v342
    %v396 = vpack.c.b16 %v345, %v344
    %v397 = vpack.c.b16 %v347, %v346
    %v398 = vpack.c.b16 %v349, %v348
    %v399 = vpack.c.b16 %v351, %v350
    %v400 = vpack.c.b16 %v353, %v352
    %v401 = vpack.c.b16 %v355, %v354
    %v402 = vpack.c.b16 %v357, %v356
    %v403 = vpack.c.b16 %v359, %v358
    %v404 = vpack.c.b16 %v361, %v360
    %v405 = vpack.c.b16 %v363, %v362
    %v406 = vpack.c.b16 %v365, %v364
    %v407 = vpack.c.b16 %v367, %v366
    %v408 = vpack.c.b16 %v369, %v368
    %v409 = vpack.c.b16 %v371, %v370
    %v410 = vpack.c.b16 %v373, %v372
    %v411 = vpack.c.b16 %v375, %v374
    %v412 = vpack.c.b16 %v377, %v376
    %v413 = vpack.c.b16 %v379, %v378
    %v414 = vpack.c.b16 %v381, %v380
    %v415 = vpack.c.b16 %v383, %v382
    %v420 = vunpack.c.l.b16 %v252
    %v421 = vunpack.c.l.b16 %v253
    %v422 = vunpack.c.l.b16 %v254
    %v423 = vunpack.c.l.b16 %v255
    %v424 = vpack.c.b16 %v421, %v420
    %v425 = vpack.c.b16 %v423, %v422
    %vm427 = vcmask 220160
    %v429 = vsel %vm427, %v384, 0
    %v432 = vsel %vm427, %v385, 0
    %v435 = vsel %vm427, %v386, 0
    %v438 = vsel %vm427, %v387, 0
    %v441 = vsel %vm427, %v388, 0
    %v444 = vsel %vm427, %v389, 0
    %v447 = vsel %vm427, %v390, 0
    %v450 = vsel %vm427, %v391, 0
    %v453 = vsel %vm427, %v392, 0
    %v456 = vsel %vm427, %v393, 0
    %v459 = vsel %vm427, %v394, 0
    %v462 = vsel %vm427, %v395, 0
    %v465 = vsel %vm427, %v396, 0
    %v468 = vsel %vm427, %v397, 0
    %v471 = vsel %vm427, %v398, 0
    %v474 = vsel %vm427, %v399, 0
    %v477 = vsel %vm427, %v400, 0
    %v480 = vsel %vm427, %v401, 0
    %v483 = vsel %vm427, %v402, 0
    %v486 = vsel %vm427, %v403, 0
    %v489 = vsel %vm427, %v404, 0
    %v492 = vsel %vm427, %v405, 0
    %v495 = vsel %vm427, %v406, 0
    %v498 = vsel %vm427, %v407, 0
    %v501 = vsel %vm427, %v408, 0
    %v504 = vsel %vm427, %v409, 0
    %v507 = vsel %vm427, %v410, 0
    %v510 = vsel %vm427, %v411, 0
    %v513 = vsel %vm427, %v412, 0
    %v516 = vsel %vm427, %v413, 0
    %v519 = vsel %vm427, %v414, 0
    %v522 = vsel %vm427, %v415, 0
    %vm524 = vcmask 1044480
    %vm525 = vcmask 1045504
    %v526 = vsel %vm524, 4294967295, 65535
    %v527 = vsel %vm525, %v526, 0
    %v529 = vand.u32 %v425, %v527
    %531 = vmatprep.subr.bf16.mxu0 0
    %532 = vmatpush1.bf16.msra.mxu0 %v424
    %533 = vmatprep.subr.bf16.mxu0 0
    %534 = vmatpush1.bf16.msra.mxu0 %v529
    %535 = vmatprep.subr.bf16.mxu0 0
    %536 = vmatpush1.bf16.msra.mxu0 0
    %537 = vmatprep.subr.bf16.mxu0 0
    %538 = vmatpush1.bf16.msra.mxu0 0
    %539 = vmatprep.subr.bf16.mxu0 0
    %540 = vmatpush1.bf16.msra.mxu0 0
    %541 = vmatprep.subr.bf16.mxu0 0
    %542 = vmatpush1.bf16.msra.mxu0 0
    %543 = vmatprep.subr.bf16.mxu0 0
    %544 = vmatpush1.bf16.msra.mxu0 0
    %545 = vmatprep.subr.bf16.mxu0 0
    %546 = vmatpush1.bf16.msra.mxu0 0
    %547 = vmatprep.subr.bf16.mxu0 0
    %548 = vmatpush1.bf16.msra.mxu0 0
    %549 = vmatprep.subr.bf16.mxu0 0
    %550 = vmatpush1.bf16.msra.mxu0 0
    %551 = vmatprep.subr.bf16.mxu0 0
    %552 = vmatpush1.bf16.msra.mxu0 0
    %553 = vmatprep.subr.bf16.mxu0 0
    %554 = vmatpush1.bf16.msra.mxu0 0
    %555 = vmatprep.subr.bf16.mxu0 0
    %556 = vmatpush1.bf16.msra.mxu0 0
    %557 = vmatprep.subr.bf16.mxu0 0
    %558 = vmatpush1.bf16.msra.mxu0 0
    %559 = vmatprep.subr.bf16.mxu0 0
    %560 = vmatpush1.bf16.msra.mxu0 0
    %561 = vmatprep.subr.bf16.mxu0 0
    %562 = vmatpush1.bf16.msra.mxu0 0
    %563 = vmatprep.mubr.bf16.mxu0 0
    %564 = vmatmul.mubr.bf16.gmra.mrb[0].mxu0 %v429
    %v565 = vpop.f32.mrb[0].mxu0
    %v566 = vadd.f32 0.0, %v565
    %v567 = vpop.f32.mrb[0].mxu0
    %v568 = vpop.f32.mrb[0].mxu0
    %v569 = vadd.f32 0.0, %v568
    %v570 = vpop.f32.mrb[0].mxu0
    %571 = vmatprep.mubr.bf16.mxu0 0
    %572 = vmatmul.mubr.bf16.gmra.mrb[0].mxu0 %v432
    %v573 = vpop.f32.mrb[0].mxu0
    %v574 = vadd.f32 0.0, %v573
    %v575 = vpop.f32.mrb[0].mxu0
    %v576 = vpop.f32.mrb[0].mxu0
    %v577 = vadd.f32 0.0, %v576
    %v578 = vpop.f32.mrb[0].mxu0
    %579 = vmatprep.mubr.bf16.mxu0 0
    %580 = vmatmul.mubr.bf16.gmra.mrb[0].mxu0 %v435
    %v581 = vpop.f32.mrb[0].mxu0
    %v582 = vadd.f32 0.0, %v581
    %v583 = vpop.f32.mrb[0].mxu0
    %v584 = vpop.f32.mrb[0].mxu0
    %v585 = vadd.f32 0.0, %v584
    %v586 = vpop.f32.mrb[0].mxu0
    %587 = vmatprep.mubr.bf16.mxu0 0
    %588 = vmatmul.mubr.bf16.gmra.mrb[0].mxu0 %v438
    %v589 = vpop.f32.mrb[0].mxu0
    %v590 = vadd.f32 0.0, %v589
    %v591 = vpop.f32.mrb[0].mxu0
    %v592 = vpop.f32.mrb[0].mxu0
    %v593 = vadd.f32 0.0, %v592
    %v594 = vpop.f32.mrb[0].mxu0
    %595 = vmatprep.mubr.bf16.mxu0 0
    %596 = vmatmul.mubr.bf16.gmra.mrb[0].mxu0 %v441
    %v597 = vpop.f32.mrb[0].mxu0
    %v598 = vadd.f32 0.0, %v597
    %v599 = vpop.f32.mrb[0].mxu0
    %v600 = vpop.f32.mrb[0].mxu0
    %v601 = vadd.f32 0.0, %v600
    %v602 = vpop.f32.mrb[0].mxu0
    %603 = vmatprep.mubr.bf16.mxu0 0
    %604 = vmatmul.mubr.bf16.gmra.mrb[0].mxu0 %v444
    %v605 = vpop.f32.mrb[0].mxu0
    %v606 = vadd.f32 0.0, %v605
    %v607 = vpop.f32.mrb[0].mxu0
    %v608 = vpop.f32.mrb[0].mxu0
    %v609 = vadd.f32 0.0, %v608
    %v610 = vpop.f32.mrb[0].mxu0
    %611 = vmatprep.mubr.bf16.mxu0 0
    %612 = vmatmul.mubr.bf16.gmra.mrb[0].mxu0 %v447
    %v613 = vpop.f32.mrb[0].mxu0
    %v614 = vadd.f32 0.0, %v613
    %v615 = vpop.f32.mrb[0].mxu0
    %v616 = vpop.f32.mrb[0].mxu0
    %v617 = vadd.f32 0.0, %v616
    %v618 = vpop.f32.mrb[0].mxu0
    %619 = vmatprep.mubr.bf16.mxu0 0
    %620 = vmatmul.mubr.bf16.gmra.mrb[0].mxu0 %v450
    %v621 = vpop.f32.mrb[0].mxu0
    %v622 = vadd.f32 0.0, %v621
    %v623 = vpop.f32.mrb[0].mxu0
    %v624 = vpop.f32.mrb[0].mxu0
    %v625 = vadd.f32 0.0, %v624
    %v626 = vpop.f32.mrb[0].mxu0
    %627 = vmatprep.mubr.bf16.mxu0 0
    %628 = vmatmul.mubr.bf16.gmra.mrb[0].mxu0 %v453
    %v629 = vpop.f32.mrb[0].mxu0
    %v630 = vadd.f32 0.0, %v629
    %v631 = vpop.f32.mrb[0].mxu0
    %v632 = vpop.f32.mrb[0].mxu0
    %v633 = vadd.f32 0.0, %v632
    %v634 = vpop.f32.mrb[0].mxu0
    %635 = vmatprep.mubr.bf16.mxu0 0
    %636 = vmatmul.mubr.bf16.gmra.mrb[0].mxu0 %v456
    %v637 = vpop.f32.mrb[0].mxu0
    %v638 = vadd.f32 0.0, %v637
    %v639 = vpop.f32.mrb[0].mxu0
    %v640 = vpop.f32.mrb[0].mxu0
    %v641 = vadd.f32 0.0, %v640
    %v642 = vpop.f32.mrb[0].mxu0
    %643 = vmatprep.mubr.bf16.mxu0 0
    %644 = vmatmul.mubr.bf16.gmra.mrb[0].mxu0 %v459
    %v645 = vpop.f32.mrb[0].mxu0
    %v646 = vadd.f32 0.0, %v645
    %v647 = vpop.f32.mrb[0].mxu0
    %v648 = vpop.f32.mrb[0].mxu0
    %v649 = vadd.f32 0.0, %v648
    %v650 = vpop.f32.mrb[0].mxu0
    %651 = vmatprep.mubr.bf16.mxu0 0
    %652 = vmatmul.mubr.bf16.gmra.mrb[0].mxu0 %v462
    %v653 = vpop.f32.mrb[0].mxu0
    %v654 = vadd.f32 0.0, %v653
    %v655 = vpop.f32.mrb[0].mxu0
    %v656 = vpop.f32.mrb[0].mxu0
    %v657 = vadd.f32 0.0, %v656
    %v658 = vpop.f32.mrb[0].mxu0
    %659 = vmatprep.mubr.bf16.mxu0 0
    %660 = vmatmul.mubr.bf16.gmra.mrb[0].mxu0 %v465
    %v661 = vpop.f32.mrb[0].mxu0
    %v662 = vadd.f32 0.0, %v661
    %v663 = vpop.f32.mrb[0].mxu0
    %v664 = vpop.f32.mrb[0].mxu0
    %v665 = vadd.f32 0.0, %v664
    %v666 = vpop.f32.mrb[0].mxu0
    %667 = vmatprep.mubr.bf16.mxu0 0
    %668 = vmatmul.mubr.bf16.gmra.mrb[0].mxu0 %v468
    %v669 = vpop.f32.mrb[0].mxu0
    %v670 = vadd.f32 0.0, %v669
    %v671 = vpop.f32.mrb[0].mxu0
    %v672 = vpop.f32.mrb[0].mxu0
    %v673 = vadd.f32 0.0, %v672
    %v674 = vpop.f32.mrb[0].mxu0
    %675 = vmatprep.mubr.bf16.mxu0 0
    %676 = vmatmul.mubr.bf16.gmra.mrb[0].mxu0 %v471
    %v677 = vpop.f32.mrb[0].mxu0
    %v678 = vadd.f32 0.0, %v677
    %v679 = vpop.f32.mrb[0].mxu0
    %v680 = vpop.f32.mrb[0].mxu0
    %v681 = vadd.f32 0.0, %v680
    %v682 = vpop.f32.mrb[0].mxu0
    %683 = vmatprep.mubr.bf16.mxu0 0
    %684 = vmatmul.mubr.bf16.gmra.mrb[0].mxu0 %v474
    %v685 = vpop.f32.mrb[0].mxu0
    %v686 = vadd.f32 0.0, %v685
    %v687 = vpop.f32.mrb[0].mxu0
    %v688 = vpop.f32.mrb[0].mxu0
    %v689 = vadd.f32 0.0, %v688
    %v690 = vpop.f32.mrb[0].mxu0
    %691 = vmatprep.mubr.bf16.mxu0 0
    %692 = vmatmul.mubr.bf16.gmra.mrb[0].mxu0 %v477
    %v693 = vpop.f32.mrb[0].mxu0
    %v694 = vadd.f32 0.0, %v693
    %v695 = vpop.f32.mrb[0].mxu0
    %v696 = vpop.f32.mrb[0].mxu0
    %v697 = vadd.f32 0.0, %v696
    %v698 = vpop.f32.mrb[0].mxu0
    %699 = vmatprep.mubr.bf16.mxu0 0
    %700 = vmatmul.mubr.bf16.gmra.mrb[0].mxu0 %v480
    %v701 = vpop.f32.mrb[0].mxu0
    %v702 = vadd.f32 0.0, %v701
    %v703 = vpop.f32.mrb[0].mxu0
    %v704 = vpop.f32.mrb[0].mxu0
    %v705 = vadd.f32 0.0, %v704
    %v706 = vpop.f32.mrb[0].mxu0
    %707 = vmatprep.mubr.bf16.mxu0 0
    %708 = vmatmul.mubr.bf16.gmra.mrb[0].mxu0 %v483
    %v709 = vpop.f32.mrb[0].mxu0
    %v710 = vadd.f32 0.0, %v709
    %v711 = vpop.f32.mrb[0].mxu0
    %v712 = vpop.f32.mrb[0].mxu0
    %v713 = vadd.f32 0.0, %v712
    %v714 = vpop.f32.mrb[0].mxu0
    %715 = vmatprep.mubr.bf16.mxu0 0
    %716 = vmatmul.mubr.bf16.gmra.mrb[0].mxu0 %v486
    %v717 = vpop.f32.mrb[0].mxu0
    %v718 = vadd.f32 0.0, %v717
    %v719 = vpop.f32.mrb[0].mxu0
    %v720 = vpop.f32.mrb[0].mxu0
    %v721 = vadd.f32 0.0, %v720
    %v722 = vpop.f32.mrb[0].mxu0
    %723 = vmatprep.mubr.bf16.mxu0 0
    %724 = vmatmul.mubr.bf16.gmra.mrb[0].mxu0 %v489
    %v725 = vpop.f32.mrb[0].mxu0
    %v726 = vadd.f32 0.0, %v725
    %v727 = vpop.f32.mrb[0].mxu0
    %v728 = vpop.f32.mrb[0].mxu0
    %v729 = vadd.f32 0.0, %v728
    %v730 = vpop.f32.mrb[0].mxu0
    %731 = vmatprep.mubr.bf16.mxu0 0
    %732 = vmatmul.mubr.bf16.gmra.mrb[0].mxu0 %v492
    %v733 = vpop.f32.mrb[0].mxu0
    %v734 = vadd.f32 0.0, %v733
    %v735 = vpop.f32.mrb[0].mxu0
    %v736 = vpop.f32.mrb[0].mxu0
    %v737 = vadd.f32 0.0, %v736
    %v738 = vpop.f32.mrb[0].mxu0
    %739 = vmatprep.mubr.bf16.mxu0 0
    %740 = vmatmul.mubr.bf16.gmra.mrb[0].mxu0 %v495
    %v741 = vpop.f32.mrb[0].mxu0
    %v742 = vadd.f32 0.0, %v741
    %v743 = vpop.f32.mrb[0].mxu0
    %v744 = vpop.f32.mrb[0].mxu0
    %v745 = vadd.f32 0.0, %v744
    %v746 = vpop.f32.mrb[0].mxu0
    %747 = vmatprep.mubr.bf16.mxu0 0
    %748 = vmatmul.mubr.bf16.gmra.mrb[0].mxu0 %v498
    %v749 = vpop.f32.mrb[0].mxu0
    %v750 = vadd.f32 0.0, %v749
    %v751 = vpop.f32.mrb[0].mxu0
    %v752 = vpop.f32.mrb[0].mxu0
    %v753 = vadd.f32 0.0, %v752
    %v754 = vpop.f32.mrb[0].mxu0
    %755 = vmatprep.mubr.bf16.mxu0 0
    %756 = vmatmul.mubr.bf16.gmra.mrb[0].mxu0 %v501
    %v757 = vpop.f32.mrb[0].mxu0
    %v758 = vadd.f32 0.0, %v757
    %v759 = vpop.f32.mrb[0].mxu0
    %v760 = vpop.f32.mrb[0].mxu0
    %v761 = vadd.f32 0.0, %v760
    %v762 = vpop.f32.mrb[0].mxu0
    %763 = vmatprep.mubr.bf16.mxu0 0
    %764 = vmatmul.mubr.bf16.gmra.mrb[0].mxu0 %v504
    %v765 = vpop.f32.mrb[0].mxu0
    %v766 = vadd.f32 0.0, %v765
    %v767 = vpop.f32.mrb[0].mxu0
    %v768 = vpop.f32.mrb[0].mxu0
    %v769 = vadd.f32 0.0, %v768
    %v770 = vpop.f32.mrb[0].mxu0
    %771 = vmatprep.mubr.bf16.mxu0 0
    %772 = vmatmul.mubr.bf16.gmra.mrb[0].mxu0 %v507
    %v773 = vpop.f32.mrb[0].mxu0
    %v774 = vadd.f32 0.0, %v773
    %v775 = vpop.f32.mrb[0].mxu0
    %v776 = vpop.f32.mrb[0].mxu0
    %v777 = vadd.f32 0.0, %v776
    %v778 = vpop.f32.mrb[0].mxu0
    %779 = vmatprep.mubr.bf16.mxu0 0
    %780 = vmatmul.mubr.bf16.gmra.mrb[0].mxu0 %v510
    %v781 = vpop.f32.mrb[0].mxu0
    %v782 = vadd.f32 0.0, %v781
    %v783 = vpop.f32.mrb[0].mxu0
    %v784 = vpop.f32.mrb[0].mxu0
    %v785 = vadd.f32 0.0, %v784
    %v786 = vpop.f32.mrb[0].mxu0
    %787 = vmatprep.mubr.bf16.mxu0 0
    %788 = vmatmul.mubr.bf16.gmra.mrb[0].mxu0 %v513
    %v789 = vpop.f32.mrb[0].mxu0
    %v790 = vadd.f32 0.0, %v789
    %v791 = vpop.f32.mrb[0].mxu0
    %v792 = vpop.f32.mrb[0].mxu0
    %v793 = vadd.f32 0.0, %v792
    %v794 = vpop.f32.mrb[0].mxu0
    %795 = vmatprep.mubr.bf16.mxu0 0
    %796 = vmatmul.mubr.bf16.gmra.mrb[0].mxu0 %v516
    %v797 = vpop.f32.mrb[0].mxu0
    %v798 = vadd.f32 0.0, %v797
    %v799 = vpop.f32.mrb[0].mxu0
    %v800 = vpop.f32.mrb[0].mxu0
    %v801 = vadd.f32 0.0, %v800
    %v802 = vpop.f32.mrb[0].mxu0
    %803 = vmatprep.mubr.bf16.mxu0 0
    %804 = vmatmul.mubr.bf16.gmra.mrb[0].mxu0 %v519
    %v805 = vpop.f32.mrb[0].mxu0
    %v806 = vadd.f32 0.0, %v805
    %v807 = vpop.f32.mrb[0].mxu0
    %v808 = vpop.f32.mrb[0].mxu0
    %v809 = vadd.f32 0.0, %v808
    %v810 = vpop.f32.mrb[0].mxu0
    %811 = vmatprep.mubr.bf16.mxu0 0
    %812 = vmatmul.mubr.bf16.gmra.mrb[0].mxu0 %v522
    %v813 = vpop.f32.mrb[0].mxu0
    %v814 = vadd.f32 0.0, %v813
    %v815 = vpop.f32.mrb[0].mxu0
    %v816 = vpop.f32.mrb[0].mxu0
    %v817 = vadd.f32 0.0, %v816
    %v818 = vpop.f32.mrb[0].mxu0
    %819 = vdwg.mxu0
    %v820 = vadd.f32 %v124, %v566
    %v821 = vadd.f32 %v125, %v569
    %v822 = vadd.f32 %v126, %v574
    %v823 = vadd.f32 %v127, %v577
    %v824 = vadd.f32 %v128, %v582
    %v825 = vadd.f32 %v129, %v585
    %v826 = vadd.f32 %v130, %v590
    %v827 = vadd.f32 %v131, %v593
    %v828 = vadd.f32 %v132, %v598
    %v829 = vadd.f32 %v133, %v601
    %v830 = vadd.f32 %v134, %v606
    %v831 = vadd.f32 %v135, %v609
    %v832 = vadd.f32 %v136, %v614
    %v833 = vadd.f32 %v137, %v617
    %v834 = vadd.f32 %v138, %v622
    %v835 = vadd.f32 %v139, %v625
    %v836 = vadd.f32 %v140, %v630
    %v837 = vadd.f32 %v141, %v633
    %v838 = vadd.f32 %v142, %v638
    %v839 = vadd.f32 %v143, %v641
    %v840 = vadd.f32 %v144, %v646
    %v841 = vadd.f32 %v145, %v649
    %v842 = vadd.f32 %v146, %v654
    %v843 = vadd.f32 %v147, %v657
    %v844 = vadd.f32 %v148, %v662
    %v845 = vadd.f32 %v149, %v665
    %v846 = vadd.f32 %v150, %v670
    %v847 = vadd.f32 %v151, %v673
    %v848 = vadd.f32 %v152, %v678
    %v849 = vadd.f32 %v153, %v681
    %v850 = vadd.f32 %v154, %v686
    %v851 = vadd.f32 %v155, %v689
    %v852 = vadd.f32 %v156, %v694
    %v853 = vadd.f32 %v157, %v697
    %v854 = vadd.f32 %v158, %v702
    %v855 = vadd.f32 %v159, %v705
    %v856 = vadd.f32 %v160, %v710
    %v857 = vadd.f32 %v161, %v713
    %v858 = vadd.f32 %v162, %v718
    %v859 = vadd.f32 %v163, %v721
    %v860 = vadd.f32 %v164, %v726
    %v861 = vadd.f32 %v165, %v729
    %v862 = vadd.f32 %v166, %v734
    %v863 = vadd.f32 %v167, %v737
    %v864 = vadd.f32 %v168, %v742
    %v865 = vadd.f32 %v169, %v745
    %v866 = vadd.f32 %v170, %v750
    %v867 = vadd.f32 %v171, %v753
    %v868 = vadd.f32 %v172, %v758
    %v869 = vadd.f32 %v173, %v761
    %v870 = vadd.f32 %v174, %v766
    %v871 = vadd.f32 %v175, %v769
    %v872 = vadd.f32 %v176, %v774
    %v873 = vadd.f32 %v177, %v777
    %v874 = vadd.f32 %v178, %v782
    %v875 = vadd.f32 %v179, %v785
    %v876 = vadd.f32 %v180, %v790
    %v877 = vadd.f32 %v181, %v793
    %v878 = vadd.f32 %v182, %v798
    %v879 = vadd.f32 %v183, %v801
    %v880 = vadd.f32 %v184, %v806
    %v881 = vadd.f32 %v185, %v809
    %v882 = vadd.f32 %v186, %v814
    %v883 = vadd.f32 %v187, %v817
    %vm884 = vcmask 195584
    %885 = vst.msk [vmem:[#allocation2] sm:$0xff] %vm884, %v820
    %886 = vst.msk [vmem:[#allocation2 + $0x8] sm:$0xff] %vm884, %v821
    %887 = vst.msk [vmem:[#allocation2 + $0x10] sm:$0xff] %vm884, %v822
    %888 = vst.msk [vmem:[#allocation2 + $0x18] sm:$0xff] %vm884, %v823
    %889 = vst.msk [vmem:[#allocation2 + $0x20] sm:$0xff] %vm884, %v824
    %890 = vst.msk [vmem:[#allocation2 + $0x28] sm:$0xff] %vm884, %v825
    %891 = vst.msk [vmem:[#allocation2 + $0x30] sm:$0xff] %vm884, %v826
    %892 = vst.msk [vmem:[#allocation2 + $0x38] sm:$0xff] %vm884, %v827
    %893 = vst.msk [vmem:[#allocation2 + $0x40] sm:$0xff] %vm884, %v828
    %894 = vst.msk [vmem:[#allocation2 + $0x48] sm:$0xff] %vm884, %v829
    %895 = vst.msk [vmem:[#allocation2 + $0x50] sm:$0xff] %vm884, %v830
    %896 = vst.msk [vmem:[#allocation2 + $0x58] sm:$0xff] %vm884, %v831
    %897 = vst.msk [vmem:[#allocation2 + $0x60] sm:$0xff] %vm884, %v832
    %898 = vst.msk [vmem:[#allocation2 + $0x68] sm:$0xff] %vm884, %v833
    %899 = vst.msk [vmem:[#allocation2 + $0x70] sm:$0xff] %vm884, %v834
    %900 = vst.msk [vmem:[#allocation2 + $0x78] sm:$0xff] %vm884, %v835
    %901 = vst.msk [vmem:[#allocation2 + $0x80] sm:$0xff] %vm884, %v836
    %902 = vst.msk [vmem:[#allocation2 + $0x88] sm:$0xff] %vm884, %v837
    %903 = vst.msk [vmem:[#allocation2 + $0x90] sm:$0xff] %vm884, %v838
    %904 = vst.msk [vmem:[#allocation2 + $0x98] sm:$0xff] %vm884, %v839
    %905 = vst.msk [vmem:[#allocation2 + $0xa0] sm:$0xff] %vm884, %v840
    %906 = vst.msk [vmem:[#allocation2 + $0xa8] sm:$0xff] %vm884, %v841
    %907 = vst.msk [vmem:[#allocation2 + $0xb0] sm:$0xff] %vm884, %v842
    %908 = vst.msk [vmem:[#allocation2 + $0xb8] sm:$0xff] %vm884, %v843
    %909 = vst.msk [vmem:[#allocation2 + $0xc0] sm:$0xff] %vm884, %v844
    %910 = vst.msk [vmem:[#allocation2 + $0xc8] sm:$0xff] %vm884, %v845
    %911 = vst.msk [vmem:[#allocation2 + $0xd0] sm:$0xff] %vm884, %v846
    %912 = vst.msk [vmem:[#allocation2 + $0xd8] sm:$0xff] %vm884, %v847
    %913 = vst.msk [vmem:[#allocation2 + $0xe0] sm:$0xff] %vm884, %v848
    %914 = vst.msk [vmem:[#allocation2 + $0xe8] sm:$0xff] %vm884, %v849
    %915 = vst.msk [vmem:[#allocation2 + $0xf0] sm:$0xff] %vm884, %v850
    %916 = vst.msk [vmem:[#allocation2 + $0xf8] sm:$0xff] %vm884, %v851
    %917 = vst.msk [vmem:[#allocation2 + $0x100] sm:$0xff] %vm884, %v852
    %918 = vst.msk [vmem:[#allocation2 + $0x108] sm:$0xff] %vm884, %v853
    %919 = vst.msk [vmem:[#allocation2 + $0x110] sm:$0xff] %vm884, %v854
    %920 = vst.msk [vmem:[#allocation2 + $0x118] sm:$0xff] %vm884, %v855
    %921 = vst.msk [vmem:[#allocation2 + $0x120] sm:$0xff] %vm884, %v856
    %922 = vst.msk [vmem:[#allocation2 + $0x128] sm:$0xff] %vm884, %v857
    %923 = vst.msk [vmem:[#allocation2 + $0x130] sm:$0xff] %vm884, %v858
    %924 = vst.msk [vmem:[#allocation2 + $0x138] sm:$0xff] %vm884, %v859
    %925 = vst.msk [vmem:[#allocation2 + $0x140] sm:$0xff] %vm884, %v860
    %926 = vst.msk [vmem:[#allocation2 + $0x148] sm:$0xff] %vm884, %v861
    %927 = vst.msk [vmem:[#allocation2 + $0x150] sm:$0xff] %vm884, %v862
    %928 = vst.msk [vmem:[#allocation2 + $0x158] sm:$0xff] %vm884, %v863
    %929 = vst.msk [vmem:[#allocation2 + $0x160] sm:$0xff] %vm884, %v864
    %930 = vst.msk [vmem:[#allocation2 + $0x168] sm:$0xff] %vm884, %v865
    %931 = vst.msk [vmem:[#allocation2 + $0x170] sm:$0xff] %vm884, %v866
    %932 = vst.msk [vmem:[#allocation2 + $0x178] sm:$0xff] %vm884, %v867
    %933 = vst.msk [vmem:[#allocation2 + $0x180] sm:$0xff] %vm884, %v868
    %934 = vst.msk [vmem:[#allocation2 + $0x188] sm:$0xff] %vm884, %v869
    %935 = vst.msk [vmem:[#allocation2 + $0x190] sm:$0xff] %vm884, %v870
    %936 = vst.msk [vmem:[#allocation2 + $0x198] sm:$0xff] %vm884, %v871
    %937 = vst.msk [vmem:[#allocation2 + $0x1a0] sm:$0xff] %vm884, %v872
    %938 = vst.msk [vmem:[#allocation2 + $0x1a8] sm:$0xff] %vm884, %v873
    %939 = vst.msk [vmem:[#allocation2 + $0x1b0] sm:$0xff] %vm884, %v874
    %940 = vst.msk [vmem:[#allocation2 + $0x1b8] sm:$0xff] %vm884, %v875
    %941 = vst.msk [vmem:[#allocation2 + $0x1c0] sm:$0xff] %vm884, %v876
    %942 = vst.msk [vmem:[#allocation2 + $0x1c8] sm:$0xff] %vm884, %v877
    %943 = vst.msk [vmem:[#allocation2 + $0x1d0] sm:$0xff] %vm884, %v878
    %944 = vst.msk [vmem:[#allocation2 + $0x1d8] sm:$0xff] %vm884, %v879
    %945 = vst.msk [vmem:[#allocation2 + $0x1e0] sm:$0xff] %vm884, %v880
    %946 = vst.msk [vmem:[#allocation2 + $0x1e8] sm:$0xff] %vm884, %v881
    %947 = vst.msk [vmem:[#allocation2 + $0x1f0] sm:$0xff] %vm884, %v882
    %948 = vst.msk [vmem:[#allocation2 + $0x1f8] sm:$0xff] %vm884, %v883
    // Predicated region
    $region30: #{stem_jit.1} parent=1 // pred_check
      %p949 = pneg %p55
    $region31: #{stem_jit.1} parent=1 // pred_check_branch
      %951 = sbr.rel (%p949) target = $region33
    $region32: #{stem_jit.1} parent=1 // pred_region
      %v952 = vld [vmem:[#allocation2] sm:$0xff]
      %v953 = vld [vmem:[#allocation2 + $0x8] sm:$0xff]
      %v954 = vld [vmem:[#allocation2 + $0x10] sm:$0xff]
      %v955 = vld [vmem:[#allocation2 + $0x18] sm:$0xff]
      %v956 = vld [vmem:[#allocation2 + $0x20] sm:$0xff]
      %v957 = vld [vmem:[#allocation2 + $0x28] sm:$0xff]
      %v958 = vld [vmem:[#allocation2 + $0x30] sm:$0xff]
      %v959 = vld [vmem:[#allocation2 + $0x38] sm:$0xff]
      %v960 = vld [vmem:[#allocation2 + $0x40] sm:$0xff]
      %v961 = vld [vmem:[#allocation2 + $0x48] sm:$0xff]
      %v962 = vld [vmem:[#allocation2 + $0x50] sm:$0xff]
      %v963 = vld [vmem:[#allocation2 + $0x58] sm:$0xff]
      %v964 = vld [vmem:[#allocation2 + $0x60] sm:$0xff]
      %v965 = vld [vmem:[#allocation2 + $0x68] sm:$0xff]
      %v966 = vld [vmem:[#allocation2 + $0x70] sm:$0xff]
      %v967 = vld [vmem:[#allocation2 + $0x78] sm:$0xff]
      %v968 = vld [vmem:[#allocation2 + $0x80] sm:$0xff]
      %v969 = vld [vmem:[#allocation2 + $0x88] sm:$0xff]
      %v970 = vld [vmem:[#allocation2 + $0x90] sm:$0xff]
      %v971 = vld [vmem:[#allocation2 + $0x98] sm:$0xff]
      %v972 = vld [vmem:[#allocation2 + $0xa0] sm:$0xff]
      %v973 = vld [vmem:[#allocation2 + $0xa8] sm:$0xff]
      %v974 = vld [vmem:[#allocation2 + $0xb0] sm:$0xff]
      %v975 = vld [vmem:[#allocation2 + $0xb8] sm:$0xff]
      %v976 = vld [vmem:[#allocation2 + $0xc0] sm:$0xff]
      %v977 = vld [vmem:[#allocation2 + $0xc8] sm:$0xff]
      %v978 = vld [vmem:[#allocation2 + $0xd0] sm:$0xff]
      %v979 = vld [vmem:[#allocation2 + $0xd8] sm:$0xff]
      %v980 = vld [vmem:[#allocation2 + $0xe0] sm:$0xff]
      %v981 = vld [vmem:[#allocation2 + $0xe8] sm:$0xff]
      %v982 = vld [vmem:[#allocation2 + $0xf0] sm:$0xff]
      %v983 = vld [vmem:[#allocation2 + $0xf8] sm:$0xff]
      %v984 = vld [vmem:[#allocation2 + $0x100] sm:$0xff]
      %v985 = vld [vmem:[#allocation2 + $0x108] sm:$0xff]
      %v986 = vld [vmem:[#allocation2 + $0x110] sm:$0xff]
      %v987 = vld [vmem:[#allocation2 + $0x118] sm:$0xff]
      %v988 = vld [vmem:[#allocation2 + $0x120] sm:$0xff]
      %v989 = vld [vmem:[#allocation2 + $0x128] sm:$0xff]
      %v990 = vld [vmem:[#allocation2 + $0x130] sm:$0xff]
      %v991 = vld [vmem:[#allocation2 + $0x138] sm:$0xff]
      %v992 = vld [vmem:[#allocation2 + $0x140] sm:$0xff]
      %v993 = vld [vmem:[#allocation2 + $0x148] sm:$0xff]
      %v994 = vld [vmem:[#allocation2 + $0x150] sm:$0xff]
      %v995 = vld [vmem:[#allocation2 + $0x158] sm:$0xff]
      %v996 = vld [vmem:[#allocation2 + $0x160] sm:$0xff]
      %v997 = vld [vmem:[#allocation2 + $0x168] sm:$0xff]
      %v998 = vld [vmem:[#allocation2 + $0x170] sm:$0xff]
      %v999 = vld [vmem:[#allocation2 + $0x178] sm:$0xff]
      %v1000 = vld [vmem:[#allocation2 + $0x180] sm:$0xff]
      %v1001 = vld [vmem:[#allocation2 + $0x188] sm:$0xff]
      %v1002 = vld [vmem:[#allocation2 + $0x190] sm:$0xff]
      %v1003 = vld [vmem:[#allocation2 + $0x198] sm:$0xff]
      %v1004 = vld [vmem:[#allocation2 + $0x1a0] sm:$0xff]
      %v1005 = vld [vmem:[#allocation2 + $0x1a8] sm:$0xff]
      %v1006 = vld [vmem:[#allocation2 + $0x1b0] sm:$0xff]
      %v1007 = vld [vmem:[#allocation2 + $0x1b8] sm:$0xff]
      %v1008 = vld [vmem:[#allocation2 + $0x1c0] sm:$0xff]
      %v1009 = vld [vmem:[#allocation2 + $0x1c8] sm:$0xff]
      %v1010 = vld [vmem:[#allocation2 + $0x1d0] sm:$0xff]
      %v1011 = vld [vmem:[#allocation2 + $0x1d8] sm:$0xff]
      %v1012 = vld [vmem:[#allocation2 + $0x1e0] sm:$0xff]
      %v1013 = vld [vmem:[#allocation2 + $0x1e8] sm:$0xff]
      %v1014 = vld [vmem:[#allocation2 + $0x1f0] sm:$0xff]
      %v1015 = vld [vmem:[#allocation2 + $0x1f8] sm:$0xff]
      %v1016 = vld [vmem:[#allocation8] sm:$0x1]
      %v1018 = vlaneseq
      %v1019 = vshrl.u32 %v1018, 7
      %v1020 = vsub.s32 0, %v1019
      %v1021 = vrot.slane %v1016, %v1020
      %v1023 = vadd.f32 %v952, %v1021
      %v1024 = vadd.f32 %v953, %v1021
      %v1025 = vadd.f32 %v954, %v1021
      %v1026 = vadd.f32 %v955, %v1021
      %v1027 = vadd.f32 %v956, %v1021
      %v1028 = vadd.f32 %v957, %v1021
      %v1029 = vadd.f32 %v958, %v1021
      %v1030 = vadd.f32 %v959, %v1021
      %v1031 = vadd.f32 %v960, %v1021
      %v1032 = vadd.f32 %v961, %v1021
      %v1033 = vadd.f32 %v962, %v1021
      %v1034 = vadd.f32 %v963, %v1021
      %v1035 = vadd.f32 %v964, %v1021
      %v1036 = vadd.f32 %v965, %v1021
      %v1037 = vadd.f32 %v966, %v1021
      %v1038 = vadd.f32 %v967, %v1021
      %v1039 = vadd.f32 %v968, %v1021
      %v1040 = vadd.f32 %v969, %v1021
      %v1041 = vadd.f32 %v970, %v1021
      %v1042 = vadd.f32 %v971, %v1021
      %v1043 = vadd.f32 %v972, %v1021
      %v1044 = vadd.f32 %v973, %v1021
      %v1045 = vadd.f32 %v974, %v1021
      %v1046 = vadd.f32 %v975, %v1021
      %v1047 = vadd.f32 %v976, %v1021
      %v1048 = vadd.f32 %v977, %v1021
      %v1049 = vadd.f32 %v978, %v1021
      %v1050 = vadd.f32 %v979, %v1021
      %v1051 = vadd.f32 %v980, %v1021
      %v1052 = vadd.f32 %v981, %v1021
      %v1053 = vadd.f32 %v982, %v1021
      %v1054 = vadd.f32 %v983, %v1021
      %v1055 = vadd.f32 %v984, %v1021
      %v1056 = vadd.f32 %v985, %v1021
      %v1057 = vadd.f32 %v986, %v1021
      %v1058 = vadd.f32 %v987, %v1021
      %v1059 = vadd.f32 %v988, %v1021
      %v1060 = vadd.f32 %v989, %v1021
      %v1061 = vadd.f32 %v990, %v1021
      %v1062 = vadd.f32 %v991, %v1021
      %v1063 = vadd.f32 %v992, %v1021
      %v1064 = vadd.f32 %v993, %v1021
      %v1065 = vadd.f32 %v994, %v1021
      %v1066 = vadd.f32 %v995, %v1021
      %v1067 = vadd.f32 %v996, %v1021
      %v1068 = vadd.f32 %v997, %v1021
      %v1069 = vadd.f32 %v998, %v1021
      %v1070 = vadd.f32 %v999, %v1021
      %v1071 = vadd.f32 %v1000, %v1021
      %v1072 = vadd.f32 %v1001, %v1021
      %v1073 = vadd.f32 %v1002, %v1021
      %v1074 = vadd.f32 %v1003, %v1021
      %v1075 = vadd.f32 %v1004, %v1021
      %v1076 = vadd.f32 %v1005, %v1021
      %v1077 = vadd.f32 %v1006, %v1021
      %v1078 = vadd.f32 %v1007, %v1021
      %v1079 = vadd.f32 %v1008, %v1021
      %v1080 = vadd.f32 %v1009, %v1021
      %v1081 = vadd.f32 %v1010, %v1021
      %v1082 = vadd.f32 %v1011, %v1021
      %v1083 = vadd.f32 %v1012, %v1021
      %v1084 = vadd.f32 %v1013, %v1021
      %v1085 = vadd.f32 %v1014, %v1021
      %v1086 = vadd.f32 %v1015, %v1021
      %v1087 = vxor.u32 %v1023, 2147483648
      %v1088 = vxor.u32 %v1024, 2147483648
      %v1089 = vxor.u32 %v1025, 2147483648
      %v1090 = vxor.u32 %v1026, 2147483648
      %v1091 = vxor.u32 %v1027, 2147483648
      %v1092 = vxor.u32 %v1028, 2147483648
      %v1093 = vxor.u32 %v1029, 2147483648
      %v1094 = vxor.u32 %v1030, 2147483648
      %v1095 = vxor.u32 %v1031, 2147483648
      %v1096 = vxor.u32 %v1032, 2147483648
      %v1097 = vxor.u32 %v1033, 2147483648
      %v1098 = vxor.u32 %v1034, 2147483648
      %v1099 = vxor.u32 %v1035, 2147483648
      %v1100 = vxor.u32 %v1036, 2147483648
      %v1101 = vxor.u32 %v1037, 2147483648
      %v1102 = vxor.u32 %v1038, 2147483648
      %v1103 = vxor.u32 %v1039, 2147483648
      %v1104 = vxor.u32 %v1040, 2147483648
      %v1105 = vxor.u32 %v1041, 2147483648
      %v1106 = vxor.u32 %v1042, 2147483648
      %v1107 = vxor.u32 %v1043, 2147483648
      %v1108 = vxor.u32 %v1044, 2147483648
      %v1109 = vxor.u32 %v1045, 2147483648
      %v1110 = vxor.u32 %v1046, 2147483648
      %v1111 = vxor.u32 %v1047, 2147483648
      %v1112 = vxor.u32 %v1048, 2147483648
      %v1113 = vxor.u32 %v1049, 2147483648
      %v1114 = vxor.u32 %v1050, 2147483648
      %v1115 = vxor.u32 %v1051, 2147483648
      %v1116 = vxor.u32 %v1052, 2147483648
      %v1117 = vxor.u32 %v1053, 2147483648
      %v1118 = vxor.u32 %v1054, 2147483648
      %v1119 = vxor.u32 %v1055, 2147483648
      %v1120 = vxor.u32 %v1056, 2147483648
      %v1121 = vxor.u32 %v1057, 2147483648
      %v1122 = vxor.u32 %v1058, 2147483648
      %v1123 = vxor.u32 %v1059, 2147483648
      %v1124 = vxor.u32 %v1060, 2147483648
      %v1125 = vxor.u32 %v1061, 2147483648
      %v1126 = vxor.u32 %v1062, 2147483648
      %v1127 = vxor.u32 %v1063, 2147483648
      %v1128 = vxor.u32 %v1064, 2147483648
      %v1129 = vxor.u32 %v1065, 2147483648
      %v1130 = vxor.u32 %v1066, 2147483648
      %v1131 = vxor.u32 %v1067, 2147483648
      %v1132 = vxor.u32 %v1068, 2147483648
      %v1133 = vxor.u32 %v1069, 2147483648
      %v1134 = vxor.u32 %v1070, 2147483648
      %v1135 = vxor.u32 %v1071, 2147483648
      %v1136 = vxor.u32 %v1072, 2147483648
      %v1137 = vxor.u32 %v1073, 2147483648
      %v1138 = vxor.u32 %v1074, 2147483648
      %v1139 = vxor.u32 %v1075, 2147483648
      %v1140 = vxor.u32 %v1076, 2147483648
      %v1141 = vxor.u32 %v1077, 2147483648
      %v1142 = vxor.u32 %v1078, 2147483648
      %v1143 = vxor.u32 %v1079, 2147483648
      %v1144 = vxor.u32 %v1080, 2147483648
      %v1145 = vxor.u32 %v1081, 2147483648
      %v1146 = vxor.u32 %v1082, 2147483648
      %v1147 = vxor.u32 %v1083, 2147483648
      %v1148 = vxor.u32 %v1084, 2147483648
      %v1149 = vxor.u32 %v1085, 2147483648
      %v1150 = vxor.u32 %v1086, 2147483648
      %v1151 = vmul.f32 %v1087, 1.442695
      %v1152 = vpow.pop %v1151
      %v1153 = vmul.f32 %v1088, 1.442695
      %v1154 = vpow.pop %v1153
      %v1155 = vmul.f32 %v1089, 1.442695
      %v1156 = vpow.pop %v1155
      %v1157 = vmul.f32 %v1090, 1.442695
      %v1158 = vpow.pop %v1157
      %v1159 = vmul.f32 %v1091, 1.442695
      %v1160 = vpow.pop %v1159
      %v1161 = vmul.f32 %v1092, 1.442695
      %v1162 = vpow.pop %v1161
      %v1163 = vmul.f32 %v1093, 1.442695
      %v1164 = vpow.pop %v1163
      %v1165 = vmul.f32 %v1094, 1.442695
      %v1166 = vpow.pop %v1165
      %v1167 = vmul.f32 %v1095, 1.442695
      %v1168 = vpow.pop %v1167
      %v1169 = vmul.f32 %v1096, 1.442695
      %v1170 = vpow.pop %v1169
      %v1171 = vmul.f32 %v1097, 1.442695
      %v1172 = vpow.pop %v1171
      %v1173 = vmul.f32 %v1098, 1.442695
      %v1174 = vpow.pop %v1173
      %v1175 = vmul.f32 %v1099, 1.442695
      %v1176 = vpow.pop %v1175
      %v1177 = vmul.f32 %v1100, 1.442695
      %v1178 = vpow.pop %v1177
      %v1179 = vmul.f32 %v1101, 1.442695
      %v1180 = vpow.pop %v1179
      %v1181 = vmul.f32 %v1102, 1.442695
      %v1182 = vpow.pop %v1181
      %v1183 = vmul.f32 %v1103, 1.442695
      %v1184 = vpow.pop %v1183
      %v1185 = vmul.f32 %v1104, 1.442695
      %v1186 = vpow.pop %v1185
      %v1187 = vmul.f32 %v1105, 1.442695
      %v1188 = vpow.pop %v1187
      %v1189 = vmul.f32 %v1106, 1.442695
      %v1190 = vpow.pop %v1189
      %v1191 = vmul.f32 %v1107, 1.442695
      %v1192 = vpow.pop %v1191
      %v1193 = vmul.f32 %v1108, 1.442695
      %v1194 = vpow.pop %v1193
      %v1195 = vmul.f32 %v1109, 1.442695
      %v1196 = vpow.pop %v1195
      %v1197 = vmul.f32 %v1110, 1.442695
      %v1198 = vpow.pop %v1197
      %v1199 = vmul.f32 %v1111, 1.442695
      %v1200 = vpow.pop %v1199
      %v1201 = vmul.f32 %v1112, 1.442695
      %v1202 = vpow.pop %v1201
      %v1203 = vmul.f32 %v1113, 1.442695
      %v1204 = vpow.pop %v1203
      %v1205 = vmul.f32 %v1114, 1.442695
      %v1206 = vpow.pop %v1205
      %v1207 = vmul.f32 %v1115, 1.442695
      %v1208 = vpow.pop %v1207
      %v1209 = vmul.f32 %v1116, 1.442695
      %v1210 = vpow.pop %v1209
      %v1211 = vmul.f32 %v1117, 1.442695
      %v1212 = vpow.pop %v1211
      %v1213 = vmul.f32 %v1118, 1.442695
      %v1214 = vpow.pop %v1213
      %v1215 = vmul.f32 %v1119, 1.442695
      %v1216 = vpow.pop %v1215
      %v1217 = vmul.f32 %v1120, 1.442695
      %v1218 = vpow.pop %v1217
      %v1219 = vmul.f32 %v1121, 1.442695
      %v1220 = vpow.pop %v1219
      %v1221 = vmul.f32 %v1122, 1.442695
      %v1222 = vpow.pop %v1221
      %v1223 = vmul.f32 %v1123, 1.442695
      %v1224 = vpow.pop %v1223
      %v1225 = vmul.f32 %v1124, 1.442695
      %v1226 = vpow.pop %v1225
      %v1227 = vmul.f32 %v1125, 1.442695
      %v1228 = vpow.pop %v1227
      %v1229 = vmul.f32 %v1126, 1.442695
      %v1230 = vpow.pop %v1229
      %v1231 = vmul.f32 %v1127, 1.442695
      %v1232 = vpow.pop %v1231
      %v1233 = vmul.f32 %v1128, 1.442695
      %v1234 = vpow.pop %v1233
      %v1235 = vmul.f32 %v1129, 1.442695
      %v1236 = vpow.pop %v1235
      %v1237 = vmul.f32 %v1130, 1.442695
      %v1238 = vpow.pop %v1237
      %v1239 = vmul.f32 %v1131, 1.442695
      %v1240 = vpow.pop %v1239
      %v1241 = vmul.f32 %v1132, 1.442695
      %v1242 = vpow.pop %v1241
      %v1243 = vmul.f32 %v1133, 1.442695
      %v1244 = vpow.pop %v1243
      %v1245 = vmul.f32 %v1134, 1.442695
      %v1246 = vpow.pop %v1245
      %v1247 = vmul.f32 %v1135, 1.442695
      %v1248 = vpow.pop %v1247
      %v1249 = vmul.f32 %v1136, 1.442695
      %v1250 = vpow.pop %v1249
      %v1251 = vmul.f32 %v1137, 1.442695
      %v1252 = vpow.pop %v1251
      %v1253 = vmul.f32 %v1138, 1.442695
      %v1254 = vpow.pop %v1253
      %v1255 = vmul.f32 %v1139, 1.442695
      %v1256 = vpow.pop %v1255
      %v1257 = vmul.f32 %v1140, 1.442695
      %v1258 = vpow.pop %v1257
      %v1259 = vmul.f32 %v1141, 1.442695
      %v1260 = vpow.pop %v1259
      %v1261 = vmul.f32 %v1142, 1.442695
      %v1262 = vpow.pop %v1261
      %v1263 = vmul.f32 %v1143, 1.442695
      %v1264 = vpow.pop %v1263
      %v1265 = vmul.f32 %v1144, 1.442695
      %v1266 = vpow.pop %v1265
      %v1267 = vmul.f32 %v1145, 1.442695
      %v1268 = vpow.pop %v1267
      %v1269 = vmul.f32 %v1146, 1.442695
      %v1270 = vpow.pop %v1269
      %v1271 = vmul.f32 %v1147, 1.442695
      %v1272 = vpow.pop %v1271
      %v1273 = vmul.f32 %v1148, 1.442695
      %v1274 = vpow.pop %v1273
      %v1275 = vmul.f32 %v1149, 1.442695
      %v1276 = vpow.pop %v1275
      %v1277 = vmul.f32 %v1150, 1.442695
      %v1278 = vpow.pop %v1277
      %v1279 = vadd.f32 %v1152, 1.0
      %v1280 = vadd.f32 %v1154, 1.0
      %v1281 = vadd.f32 %v1156, 1.0
      %v1282 = vadd.f32 %v1158, 1.0
      %v1283 = vadd.f32 %v1160, 1.0
      %v1284 = vadd.f32 %v1162, 1.0
      %v1285 = vadd.f32 %v1164, 1.0
      %v1286 = vadd.f32 %v1166, 1.0
      %v1287 = vadd.f32 %v1168, 1.0
      %v1288 = vadd.f32 %v1170, 1.0
      %v1289 = vadd.f32 %v1172, 1.0
      %v1290 = vadd.f32 %v1174, 1.0
      %v1291 = vadd.f32 %v1176, 1.0
      %v1292 = vadd.f32 %v1178, 1.0
      %v1293 = vadd.f32 %v1180, 1.0
      %v1294 = vadd.f32 %v1182, 1.0
      %v1295 = vadd.f32 %v1184, 1.0
      %v1296 = vadd.f32 %v1186, 1.0
      %v1297 = vadd.f32 %v1188, 1.0
      %v1298 = vadd.f32 %v1190, 1.0
      %v1299 = vadd.f32 %v1192, 1.0
      %v1300 = vadd.f32 %v1194, 1.0
      %v1301 = vadd.f32 %v1196, 1.0
      %v1302 = vadd.f32 %v1198, 1.0
      %v1303 = vadd.f32 %v1200, 1.0
      %v1304 = vadd.f32 %v1202, 1.0
      %v1305 = vadd.f32 %v1204, 1.0
      %v1306 = vadd.f32 %v1206, 1.0
      %v1307 = vadd.f32 %v1208, 1.0
      %v1308 = vadd.f32 %v1210, 1.0
      %v1309 = vadd.f32 %v1212, 1.0
      %v1310 = vadd.f32 %v1214, 1.0
      %v1311 = vadd.f32 %v1216, 1.0
      %v1312 = vadd.f32 %v1218, 1.0
      %v1313 = vadd.f32 %v1220, 1.0
      %v1314 = vadd.f32 %v1222, 1.0
      %v1315 = vadd.f32 %v1224, 1.0
      %v1316 = vadd.f32 %v1226, 1.0
      %v1317 = vadd.f32 %v1228, 1.0
      %v1318 = vadd.f32 %v1230, 1.0
      %v1319 = vadd.f32 %v1232, 1.0
      %v1320 = vadd.f32 %v1234, 1.0
      %v1321 = vadd.f32 %v1236, 1.0
      %v1322 = vadd.f32 %v1238, 1.0
      %v1323 = vadd.f32 %v1240, 1.0
      %v1324 = vadd.f32 %v1242, 1.0
      %v1325 = vadd.f32 %v1244, 1.0
      %v1326 = vadd.f32 %v1246, 1.0
      %v1327 = vadd.f32 %v1248, 1.0
      %v1328 = vadd.f32 %v1250, 1.0
      %v1329 = vadd.f32 %v1252, 1.0
      %v1330 = vadd.f32 %v1254, 1.0
      %v1331 = vadd.f32 %v1256, 1.0
      %v1332 = vadd.f32 %v1258, 1.0
      %v1333 = vadd.f32 %v1260, 1.0
      %v1334 = vadd.f32 %v1262, 1.0
      %v1335 = vadd.f32 %v1264, 1.0
      %v1336 = vadd.f32 %v1266, 1.0
      %v1337 = vadd.f32 %v1268, 1.0
      %v1338 = vadd.f32 %v1270, 1.0
      %v1339 = vadd.f32 %v1272, 1.0
      %v1340 = vadd.f32 %v1274, 1.0
      %v1341 = vadd.f32 %v1276, 1.0
      %v1342 = vadd.f32 %v1278, 1.0
      %v1343 = vrcp.pop %v1279
      %v1344 = vmul.f32 1.0, %v1343
      %v1345 = vrcp.pop %v1280
      %v1346 = vmul.f32 1.0, %v1345
      %v1347 = vrcp.pop %v1281
      %v1348 = vmul.f32 1.0, %v1347
      %v1349 = vrcp.pop %v1282
      %v1350 = vmul.f32 1.0, %v1349
      %v1351 = vrcp.pop %v1283
      %v1352 = vmul.f32 1.0, %v1351
      %v1353 = vrcp.pop %v1284
      %v1354 = vmul.f32 1.0, %v1353
      %v1355 = vrcp.pop %v1285
      %v1356 = vmul.f32 1.0, %v1355
      %v1357 = vrcp.pop %v1286
      %v1358 = vmul.f32 1.0, %v1357
      %v1359 = vrcp.pop %v1287
      %v1360 = vmul.f32 1.0, %v1359
      %v1361 = vrcp.pop %v1288
      %v1362 = vmul.f32 1.0, %v1361
      %v1363 = vrcp.pop %v1289
      %v1364 = vmul.f32 1.0, %v1363
      %v1365 = vrcp.pop %v1290
      %v1366 = vmul.f32 1.0, %v1365
      %v1367 = vrcp.pop %v1291
      %v1368 = vmul.f32 1.0, %v1367
      %v1369 = vrcp.pop %v1292
      %v1370 = vmul.f32 1.0, %v1369
      %v1371 = vrcp.pop %v1293
      %v1372 = vmul.f32 1.0, %v1371
      %v1373 = vrcp.pop %v1294
      %v1374 = vmul.f32 1.0, %v1373
      %v1375 = vrcp.pop %v1295
      %v1376 = vmul.f32 1.0, %v1375
      %v1377 = vrcp.pop %v1296
      %v1378 = vmul.f32 1.0, %v1377
      %v1379 = vrcp.pop %v1297
      %v1380 = vmul.f32 1.0, %v1379
      %v1381 = vrcp.pop %v1298
      %v1382 = vmul.f32 1.0, %v1381
      %v1383 = vrcp.pop %v1299
      %v1384 = vmul.f32 1.0, %v1383
      %v1385 = vrcp.pop %v1300
      %v1386 = vmul.f32 1.0, %v1385
      %v1387 = vrcp.pop %v1301
      %v1388 = vmul.f32 1.0, %v1387
      %v1389 = vrcp.pop %v1302
      %v1390 = vmul.f32 1.0, %v1389
      %v1391 = vrcp.pop %v1303
      %v1392 = vmul.f32 1.0, %v1391
      %v1393 = vrcp.pop %v1304
      %v1394 = vmul.f32 1.0, %v1393
      %v1395 = vrcp.pop %v1305
      %v1396 = vmul.f32 1.0, %v1395
      %v1397 = vrcp.pop %v1306
      %v1398 = vmul.f32 1.0, %v1397
      %v1399 = vrcp.pop %v1307
      %v1400 = vmul.f32 1.0, %v1399
      %v1401 = vrcp.pop %v1308
      %v1402 = vmul.f32 1.0, %v1401
      %v1403 = vrcp.pop %v1309
      %v1404 = vmul.f32 1.0, %v1403
      %v1405 = vrcp.pop %v1310
      %v1406 = vmul.f32 1.0, %v1405
      %v1407 = vrcp.pop %v1311
      %v1408 = vmul.f32 1.0, %v1407
      %v1409 = vrcp.pop %v1312
      %v1410 = vmul.f32 1.0, %v1409
      %v1411 = vrcp.pop %v1313
      %v1412 = vmul.f32 1.0, %v1411
      %v1413 = vrcp.pop %v1314
      %v1414 = vmul.f32 1.0, %v1413
      %v1415 = vrcp.pop %v1315
      %v1416 = vmul.f32 1.0, %v1415
      %v1417 = vrcp.pop %v1316
      %v1418 = vmul.f32 1.0, %v1417
      %v1419 = vrcp.pop %v1317
      %v1420 = vmul.f32 1.0, %v1419
      %v1421 = vrcp.pop %v1318
      %v1422 = vmul.f32 1.0, %v1421
      %v1423 = vrcp.pop %v1319
      %v1424 = vmul.f32 1.0, %v1423
      %v1425 = vrcp.pop %v1320
      %v1426 = vmul.f32 1.0, %v1425
      %v1427 = vrcp.pop %v1321
      %v1428 = vmul.f32 1.0, %v1427
      %v1429 = vrcp.pop %v1322
      %v1430 = vmul.f32 1.0, %v1429
      %v1431 = vrcp.pop %v1323
      %v1432 = vmul.f32 1.0, %v1431
      %v1433 = vrcp.pop %v1324
      %v1434 = vmul.f32 1.0, %v1433
      %v1435 = vrcp.pop %v1325
      %v1436 = vmul.f32 1.0, %v1435
      %v1437 = vrcp.pop %v1326
      %v1438 = vmul.f32 1.0, %v1437
      %v1439 = vrcp.pop %v1327
      %v1440 = vmul.f32 1.0, %v1439
      %v1441 = vrcp.pop %v1328
      %v1442 = vmul.f32 1.0, %v1441
      %v1443 = vrcp.pop %v1329
      %v1444 = vmul.f32 1.0, %v1443
      %v1445 = vrcp.pop %v1330
      %v1446 = vmul.f32 1.0, %v1445
      %v1447 = vrcp.pop %v1331
      %v1448 = vmul.f32 1.0, %v1447
      %v1449 = vrcp.pop %v1332
      %v1450 = vmul.f32 1.0, %v1449
      %v1451 = vrcp.pop %v1333
      %v1452 = vmul.f32 1.0, %v1451
      %v1453 = vrcp.pop %v1334
      %v1454 = vmul.f32 1.0, %v1453
      %v1455 = vrcp.pop %v1335
      %v1456 = vmul.f32 1.0, %v1455
      %v1457 = vrcp.pop %v1336
      %v1458 = vmul.f32 1.0, %v1457
      %v1459 = vrcp.pop %v1337
      %v1460 = vmul.f32 1.0, %v1459
      %v1461 = vrcp.pop %v1338
      %v1462 = vmul.f32 1.0, %v1461
      %v1463 = vrcp.pop %v1339
      %v1464 = vmul.f32 1.0, %v1463
      %v1465 = vrcp.pop %v1340
      %v1466 = vmul.f32 1.0, %v1465
      %v1467 = vrcp.pop %v1341
      %v1468 = vmul.f32 1.0, %v1467
      %v1469 = vrcp.pop %v1342
      %v1470 = vmul.f32 1.0, %v1469
      %v1471 = vmul.f32 %v1023, %v1344
      %v1472 = vmul.f32 %v1024, %v1346
      %v1473 = vmul.f32 %v1025, %v1348
      %v1474 = vmul.f32 %v1026, %v1350
      %v1475 = vmul.f32 %v1027, %v1352
      %v1476 = vmul.f32 %v1028, %v1354
      %v1477 = vmul.f32 %v1029, %v1356
      %v1478 = vmul.f32 %v1030, %v1358
      %v1479 = vmul.f32 %v1031, %v1360
      %v1480 = vmul.f32 %v1032, %v1362
      %v1481 = vmul.f32 %v1033, %v1364
      %v1482 = vmul.f32 %v1034, %v1366
      %v1483 = vmul.f32 %v1035, %v1368
      %v1484 = vmul.f32 %v1036, %v1370
      %v1485 = vmul.f32 %v1037, %v1372
      %v1486 = vmul.f32 %v1038, %v1374
      %v1487 = vmul.f32 %v1039, %v1376
      %v1488 = vmul.f32 %v1040, %v1378
      %v1489 = vmul.f32 %v1041, %v1380
      %v1490 = vmul.f32 %v1042, %v1382
      %v1491 = vmul.f32 %v1043, %v1384
      %v1492 = vmul.f32 %v1044, %v1386
      %v1493 = vmul.f32 %v1045, %v1388
      %v1494 = vmul.f32 %v1046, %v1390
      %v1495 = vmul.f32 %v1047, %v1392
      %v1496 = vmul.f32 %v1048, %v1394
      %v1497 = vmul.f32 %v1049, %v1396
      %v1498 = vmul.f32 %v1050, %v1398
      %v1499 = vmul.f32 %v1051, %v1400
      %v1500 = vmul.f32 %v1052, %v1402
      %v1501 = vmul.f32 %v1053, %v1404
      %v1502 = vmul.f32 %v1054, %v1406
      %v1503 = vmul.f32 %v1055, %v1408
      %v1504 = vmul.f32 %v1056, %v1410
      %v1505 = vmul.f32 %v1057, %v1412
      %v1506 = vmul.f32 %v1058, %v1414
      %v1507 = vmul.f32 %v1059, %v1416
      %v1508 = vmul.f32 %v1060, %v1418
      %v1509 = vmul.f32 %v1061, %v1420
      %v1510 = vmul.f32 %v1062, %v1422
      %v1511 = vmul.f32 %v1063, %v1424
      %v1512 = vmul.f32 %v1064, %v1426
      %v1513 = vmul.f32 %v1065, %v1428
      %v1514 = vmul.f32 %v1066, %v1430
      %v1515 = vmul.f32 %v1067, %v1432
      %v1516 = vmul.f32 %v1068, %v1434
      %v1517 = vmul.f32 %v1069, %v1436
      %v1518 = vmul.f32 %v1070, %v1438
      %v1519 = vmul.f32 %v1071, %v1440
      %v1520 = vmul.f32 %v1072, %v1442
      %v1521 = vmul.f32 %v1073, %v1444
      %v1522 = vmul.f32 %v1074, %v1446
      %v1523 = vmul.f32 %v1075, %v1448
      %v1524 = vmul.f32 %v1076, %v1450
      %v1525 = vmul.f32 %v1077, %v1452
      %v1526 = vmul.f32 %v1078, %v1454
      %v1527 = vmul.f32 %v1079, %v1456
      %v1528 = vmul.f32 %v1080, %v1458
      %v1529 = vmul.f32 %v1081, %v1460
      %v1530 = vmul.f32 %v1082, %v1462
      %v1531 = vmul.f32 %v1083, %v1464
      %v1532 = vmul.f32 %v1084, %v1466
      %v1533 = vmul.f32 %v1085, %v1468
      %v1534 = vmul.f32 %v1086, %v1470
      %v1535 = vpack.c.bf16 %v1472, %v1471
      %v1536 = vpack.c.bf16 %v1474, %v1473
      %v1537 = vpack.c.bf16 %v1476, %v1475
      %v1538 = vpack.c.bf16 %v1478, %v1477
      %v1539 = vpack.c.bf16 %v1480, %v1479
      %v1540 = vpack.c.bf16 %v1482, %v1481
      %v1541 = vpack.c.bf16 %v1484, %v1483
      %v1542 = vpack.c.bf16 %v1486, %v1485
      %v1543 = vpack.c.bf16 %v1488, %v1487
      %v1544 = vpack.c.bf16 %v1490, %v1489
      %v1545 = vpack.c.bf16 %v1492, %v1491
      %v1546 = vpack.c.bf16 %v1494, %v1493
      %v1547 = vpack.c.bf16 %v1496, %v1495
      %v1548 = vpack.c.bf16 %v1498, %v1497
      %v1549 = vpack.c.bf16 %v1500, %v1499
      %v1550 = vpack.c.bf16 %v1502, %v1501
      %v1551 = vpack.c.bf16 %v1504, %v1503
      %v1552 = vpack.c.bf16 %v1506, %v1505
      %v1553 = vpack.c.bf16 %v1508, %v1507
      %v1554 = vpack.c.bf16 %v1510, %v1509
      %v1555 = vpack.c.bf16 %v1512, %v1511
      %v1556 = vpack.c.bf16 %v1514, %v1513
      %v1557 = vpack.c.bf16 %v1516, %v1515
      %v1558 = vpack.c.bf16 %v1518, %v1517
      %v1559 = vpack.c.bf16 %v1520, %v1519
      %v1560 = vpack.c.bf16 %v1522, %v1521
      %v1561 = vpack.c.bf16 %v1524, %v1523
      %v1562 = vpack.c.bf16 %v1526, %v1525
      %v1563 = vpack.c.bf16 %v1528, %v1527
      %v1564 = vpack.c.bf16 %v1530, %v1529
      %v1565 = vpack.c.bf16 %v1532, %v1531
      %v1566 = vpack.c.bf16 %v1534, %v1533
      %v1599 = vunpack.c.l.b16 %v1535
      %v1600 = vunpack.c.h.b16 %v1535
      %v1601 = vunpack.c.l.b16 %v1536
      %v1602 = vunpack.c.h.b16 %v1536
      %v1603 = vunpack.c.l.b16 %v1537
      %v1604 = vunpack.c.h.b16 %v1537
      %v1605 = vunpack.c.l.b16 %v1538
      %v1606 = vunpack.c.h.b16 %v1538
      %v1607 = vunpack.c.l.b16 %v1539
      %v1608 = vunpack.c.h.b16 %v1539
      %v1609 = vunpack.c.l.b16 %v1540
      %v1610 = vunpack.c.h.b16 %v1540
      %v1611 = vunpack.c.l.b16 %v1541
      %v1612 = vunpack.c.h.b16 %v1541
      %v1613 = vunpack.c.l.b16 %v1542
      %v1614 = vunpack.c.h.b16 %v1542
      %v1615 = vunpack.c.l.b16 %v1543
      %v1616 = vunpack.c.h.b16 %v1543
      %v1617 = vunpack.c.l.b16 %v1544
      %v1618 = vunpack.c.h.b16 %v1544
      %v1619 = vunpack.c.l.b16 %v1545
      %v1620 = vunpack.c.h.b16 %v1545
      %v1621 = vunpack.c.l.b16 %v1546
      %v1622 = vunpack.c.h.b16 %v1546
      %v1623 = vunpack.c.l.b16 %v1547
      %v1624 = vunpack.c.h.b16 %v1547
      %v1625 = vunpack.c.l.b16 %v1548
      %v1626 = vunpack.c.h.b16 %v1548
      %v1627 = vunpack.c.l.b16 %v1549
      %v1628 = vunpack.c.h.b16 %v1549
      %v1629 = vunpack.c.l.b16 %v1550
      %v1630 = vunpack.c.h.b16 %v1550
      %v1631 = vunpack.c.l.b16 %v1551
      %v1632 = vunpack.c.h.b16 %v1551
      %v1633 = vunpack.c.l.b16 %v1552
      %v1634 = vunpack.c.h.b16 %v1552
      %v1635 = vunpack.c.l.b16 %v1553
      %v1636 = vunpack.c.h.b16 %v1553
      %v1637 = vunpack.c.l.b16 %v1554
      %v1638 = vunpack.c.h.b16 %v1554
      %v1639 = vunpack.c.l.b16 %v1555
      %v1640 = vunpack.c.h.b16 %v1555
      %v1641 = vunpack.c.l.b16 %v1556
      %v1642 = vunpack.c.h.b16 %v1556
      %v1643 = vunpack.c.l.b16 %v1557
      %v1644 = vunpack.c.h.b16 %v1557
      %v1645 = vunpack.c.l.b16 %v1558
      %v1646 = vunpack.c.h.b16 %v1558
      %v1647 = vunpack.c.l.b16 %v1559
      %v1648 = vunpack.c.h.b16 %v1559
      %v1649 = vunpack.c.l.b16 %v1560
      %v1650 = vunpack.c.h.b16 %v1560
      %v1651 = vunpack.c.l.b16 %v1561
      %v1652 = vunpack.c.h.b16 %v1561
      %v1653 = vunpack.c.l.b16 %v1562
      %v1654 = vunpack.c.h.b16 %v1562
      %v1655 = vunpack.c.l.b16 %v1563
      %v1656 = vunpack.c.h.b16 %v1563
      %v1657 = vunpack.c.l.b16 %v1564
      %v1658 = vunpack.c.h.b16 %v1564
      %v1659 = vunpack.c.l.b16 %v1565
      %v1660 = vunpack.c.h.b16 %v1565
      %v1661 = vunpack.c.l.b16 %v1566
      %v1662 = vunpack.c.h.b16 %v1566
      %v1663 = vpack.c.b16 %v1599, %v1599
      %v1664 = vpack.c.b16 %v1600, %v1600
      %v1665 = vpack.c.b16 %v1601, %v1601
      %v1666 = vpack.c.b16 %v1602, %v1602
      %v1667 = vpack.c.b16 %v1603, %v1603
      %v1668 = vpack.c.b16 %v1604, %v1604
      %v1669 = vpack.c.b16 %v1605, %v1605
      %v1670 = vpack.c.b16 %v1606, %v1606
      %v1671 = vpack.c.b16 %v1607, %v1607
      %v1672 = vpack.c.b16 %v1608, %v1608
      %v1673 = vpack.c.b16 %v1609, %v1609
      %v1674 = vpack.c.b16 %v1610, %v1610
      %v1675 = vpack.c.b16 %v1611, %v1611
      %v1676 = vpack.c.b16 %v1612, %v1612
      %v1677 = vpack.c.b16 %v1613, %v1613
      %v1678 = vpack.c.b16 %v1614, %v1614
      %v1679 = vpack.c.b16 %v1615, %v1615
      %v1680 = vpack.c.b16 %v1616, %v1616
      %v1681 = vpack.c.b16 %v1617, %v1617
      %v1682 = vpack.c.b16 %v1618, %v1618
      %v1683 = vpack.c.b16 %v1619, %v1619
      %v1684 = vpack.c.b16 %v1620, %v1620
      %v1685 = vpack.c.b16 %v1621, %v1621
      %v1686 = vpack.c.b16 %v1622, %v1622
      %v1687 = vpack.c.b16 %v1623, %v1623
      %v1688 = vpack.c.b16 %v1624, %v1624
      %v1689 = vpack.c.b16 %v1625, %v1625
      %v1690 = vpack.c.b16 %v1626, %v1626
      %v1691 = vpack.c.b16 %v1627, %v1627
      %v1692 = vpack.c.b16 %v1628, %v1628
      %v1693 = vpack.c.b16 %v1629, %v1629
      %v1694 = vpack.c.b16 %v1630, %v1630
      %v1695 = vpack.c.b16 %v1631, %v1631
      %v1696 = vpack.c.b16 %v1632, %v1632
      %v1697 = vpack.c.b16 %v1633, %v1633
      %v1698 = vpack.c.b16 %v1634, %v1634
      %v1699 = vpack.c.b16 %v1635, %v1635
      %v1700 = vpack.c.b16 %v1636, %v1636
      %v1701 = vpack.c.b16 %v1637, %v1637
      %v1702 = vpack.c.b16 %v1638, %v1638
      %v1703 = vpack.c.b16 %v1639, %v1639
      %v1704 = vpack.c.b16 %v1640, %v1640
      %v1705 = vpack.c.b16 %v1641, %v1641
      %v1706 = vpack.c.b16 %v1642, %v1642
      %v1707 = vpack.c.b16 %v1643, %v1643
      %v1708 = vpack.c.b16 %v1644, %v1644
      %v1709 = vpack.c.b16 %v1645, %v1645
      %v1710 = vpack.c.b16 %v1646, %v1646
      %v1711 = vpack.c.b16 %v1647, %v1647
      %v1712 = vpack.c.b16 %v1648, %v1648
      %v1713 = vpack.c.b16 %v1649, %v1649
      %v1714 = vpack.c.b16 %v1650, %v1650
      %v1715 = vpack.c.b16 %v1651, %v1651
      %v1716 = vpack.c.b16 %v1652, %v1652
      %v1717 = vpack.c.b16 %v1653, %v1653
      %v1718 = vpack.c.b16 %v1654, %v1654
      %v1719 = vpack.c.b16 %v1655, %v1655
      %v1720 = vpack.c.b16 %v1656, %v1656
      %v1721 = vpack.c.b16 %v1657, %v1657
      %v1722 = vpack.c.b16 %v1658, %v1658
      %v1723 = vpack.c.b16 %v1659, %v1659
      %v1724 = vpack.c.b16 %v1660, %v1660
      %v1725 = vpack.c.b16 %v1661, %v1661
      %v1726 = vpack.c.b16 %v1662, %v1662
      %vm1791 = vcmask 191488
      %1792 = vst.msk [vmem:[#allocation9] sm:$0xf] %vm1791, %v1663
      %1793 = vst.msk [vmem:[#allocation9 + $0x4] sm:$0xf] %vm1791, %v1664
      %1794 = vst.msk [vmem:[#allocation9 + $0x8] sm:$0xf] %vm1791, %v1665
      %1795 = vst.msk [vmem:[#allocation9 + $0xc] sm:$0xf] %vm1791, %v1666
      %1796 = vst.msk [vmem:[#allocation9 + $0x10] sm:$0xf] %vm1791, %v1667
      %1797 = vst.msk [vmem:[#allocation9 + $0x14] sm:$0xf] %vm1791, %v1668
      %1798 = vst.msk [vmem:[#allocation9 + $0x18] sm:$0xf] %vm1791, %v1669
      %1799 = vst.msk [vmem:[#allocation9 + $0x1c] sm:$0xf] %vm1791, %v1670
      %1800 = vst.msk [vmem:[#allocation9 + $0x20] sm:$0xf] %vm1791, %v1671
      %1801 = vst.msk [vmem:[#allocation9 + $0x24] sm:$0xf] %vm1791, %v1672
      %1802 = vst.msk [vmem:[#allocation9 + $0x28] sm:$0xf] %vm1791, %v1673
      %1803 = vst.msk [vmem:[#allocation9 + $0x2c] sm:$0xf] %vm1791, %v1674
      %1804 = vst.msk [vmem:[#allocation9 + $0x30] sm:$0xf] %vm1791, %v1675
      %1805 = vst.msk [vmem:[#allocation9 + $0x34] sm:$0xf] %vm1791, %v1676
      %1806 = vst.msk [vmem:[#allocation9 + $0x38] sm:$0xf] %vm1791, %v1677
      %1807 = vst.msk [vmem:[#allocation9 + $0x3c] sm:$0xf] %vm1791, %v1678
      %1808 = vst.msk [vmem:[#allocation9 + $0x40] sm:$0xf] %vm1791, %v1679
      %1809 = vst.msk [vmem:[#allocation9 + $0x44] sm:$0xf] %vm1791, %v1680
      %1810 = vst.msk [vmem:[#allocation9 + $0x48] sm:$0xf] %vm1791, %v1681
      %1811 = vst.msk [vmem:[#allocation9 + $0x4c] sm:$0xf] %vm1791, %v1682
      %1812 = vst.msk [vmem:[#allocation9 + $0x50] sm:$0xf] %vm1791, %v1683
      %1813 = vst.msk [vmem:[#allocation9 + $0x54] sm:$0xf] %vm1791, %v1684
      %1814 = vst.msk [vmem:[#allocation9 + $0x58] sm:$0xf] %vm1791, %v1685
      %1815 = vst.msk [vmem:[#allocation9 + $0x5c] sm:$0xf] %vm1791, %v1686
      %1816 = vst.msk [vmem:[#allocation9 + $0x60] sm:$0xf] %vm1791, %v1687
      %1817 = vst.msk [vmem:[#allocation9 + $0x64] sm:$0xf] %vm1791, %v1688
      %1818 = vst.msk [vmem:[#allocation9 + $0x68] sm:$0xf] %vm1791, %v1689
      %1819 = vst.msk [vmem:[#allocation9 + $0x6c] sm:$0xf] %vm1791, %v1690
      %1820 = vst.msk [vmem:[#allocation9 + $0x70] sm:$0xf] %vm1791, %v1691
      %1821 = vst.msk [vmem:[#allocation9 + $0x74] sm:$0xf] %vm1791, %v1692
      %1822 = vst.msk [vmem:[#allocation9 + $0x78] sm:$0xf] %vm1791, %v1693
      %1823 = vst.msk [vmem:[#allocation9 + $0x7c] sm:$0xf] %vm1791, %v1694
      %1824 = vst.msk [vmem:[#allocation9 + $0x80] sm:$0xf] %vm1791, %v1695
      %1825 = vst.msk [vmem:[#allocation9 + $0x84] sm:$0xf] %vm1791, %v1696
      %1826 = vst.msk [vmem:[#allocation9 + $0x88] sm:$0xf] %vm1791, %v1697
      %1827 = vst.msk [vmem:[#allocation9 + $0x8c] sm:$0xf] %vm1791, %v1698
      %1828 = vst.msk [vmem:[#allocation9 + $0x90] sm:$0xf] %vm1791, %v1699
      %1829 = vst.msk [vmem:[#allocation9 + $0x94] sm:$0xf] %vm1791, %v1700
      %1830 = vst.msk [vmem:[#allocation9 + $0x98] sm:$0xf] %vm1791, %v1701
      %1831 = vst.msk [vmem:[#allocation9 + $0x9c] sm:$0xf] %vm1791, %v1702
      %1832 = vst.msk [vmem:[#allocation9 + $0xa0] sm:$0xf] %vm1791, %v1703
      %1833 = vst.msk [vmem:[#allocation9 + $0xa4] sm:$0xf] %vm1791, %v1704
      %1834 = vst.msk [vmem:[#allocation9 + $0xa8] sm:$0xf] %vm1791, %v1705
      %1835 = vst.msk [vmem:[#allocation9 + $0xac] sm:$0xf] %vm1791, %v1706
      %1836 = vst.msk [vmem:[#allocation9 + $0xb0] sm:$0xf] %vm1791, %v1707
      %1837 = vst.msk [vmem:[#allocation9 + $0xb4] sm:$0xf] %vm1791, %v1708
      %1838 = vst.msk [vmem:[#allocation9 + $0xb8] sm:$0xf] %vm1791, %v1709
      %1839 = vst.msk [vmem:[#allocation9 + $0xbc] sm:$0xf] %vm1791, %v1710
      %1840 = vst.msk [vmem:[#allocation9 + $0xc0] sm:$0xf] %vm1791, %v1711
      %1841 = vst.msk [vmem:[#allocation9 + $0xc4] sm:$0xf] %vm1791, %v1712
      %1842 = vst.msk [vmem:[#allocation9 + $0xc8] sm:$0xf] %vm1791, %v1713
      %1843 = vst.msk [vmem:[#allocation9 + $0xcc] sm:$0xf] %vm1791, %v1714
      %1844 = vst.msk [vmem:[#allocation9 + $0xd0] sm:$0xf] %vm1791, %v1715
      %1845 = vst.msk [vmem:[#allocation9 + $0xd4] sm:$0xf] %vm1791, %v1716
      %1846 = vst.msk [vmem:[#allocation9 + $0xd8] sm:$0xf] %vm1791, %v1717
      %1847 = vst.msk [vmem:[#allocation9 + $0xdc] sm:$0xf] %vm1791, %v1718
      %1848 = vst.msk [vmem:[#allocation9 + $0xe0] sm:$0xf] %vm1791, %v1719
      %1849 = vst.msk [vmem:[#allocation9 + $0xe4] sm:$0xf] %vm1791, %v1720
      %1850 = vst.msk [vmem:[#allocation9 + $0xe8] sm:$0xf] %vm1791, %v1721
      %1851 = vst.msk [vmem:[#allocation9 + $0xec] sm:$0xf] %vm1791, %v1722
      %1852 = vst.msk [vmem:[#allocation9 + $0xf0] sm:$0xf] %vm1791, %v1723
      %1853 = vst.msk [vmem:[#allocation9 + $0xf4] sm:$0xf] %vm1791, %v1724
      %1854 = vst.msk [vmem:[#allocation9 + $0xf8] sm:$0xf] %vm1791, %v1725
      %1855 = vst.msk [vmem:[#allocation9 + $0xfc] sm:$0xf] %vm1791, %v1726
    $region33: #{stem_jit.1} parent=1 // pred_fallthru
      _
    // Predicated region
    $region34: #{stem_jit.1} parent=1 // pred_check
      _
    $region35: #{stem_jit.1} parent=1 // pred_check_branch
      %1857 = sbr.rel (0) target = $region37
    $region36: #{stem_jit.1} parent=1 // pred_region
      %s1859 = ssub.s32 4096, 4096
      %1860 = vsyncadd [#allocation5], %s1859
      %s1861 = sshll.u32 [#allocation9], 4
      %s1862 = int_to_ptr.vmem [resolvable:$true] %s1861
      %1867 = dma.vmem_to_hbm [thread:$0]  %s1862, 4096, %s3, [#allocation5], 64, 64, 4
    $region37: #{stem_jit.1} parent=1 // pred_fallthru
      _
    // Predicated region
    $region38: #{stem_jit.1} parent=1 // pred_check
      _
    $region39: #{stem_jit.1} parent=1 // pred_check_branch
      %1869 = sbr.rel (0) target = $region41
    $region40: #{stem_jit.1} parent=1 // pred_region
      %1870 = dma.done [#allocation5], 4096
    $region41: #{stem_jit.1} parent=1 // pred_fallthru
      _
    %1871 = vsyncpa [#allocation4], 1
    %1872 = vsyncpa [#allocation7], 1
    %1873 = vsyncpa [#allocation5], 1

</llo_original>
